<compile_context>
chip_gen: v5e
topology: v5e:2x2
jax: 0.10.0
libtpu: 0.0.40
codegen_flags: <defaults>
</compile_context>

<pallas_src>
import math
from functools import partial

import numpy as np
import jax
import jax.numpy as jnp
from jax import lax
from jax.experimental import pallas as pl
from jax.experimental.pallas import tpu as pltpu


# --------------------- noise schedule (numpy, matches the PyTorch module) ---
def make_beta_schedule_linear(n_timestep):
    scale = 1000.0 / n_timestep
    return np.linspace(scale * 0.0001, scale * 0.02, n_timestep,
                       dtype=np.float64)


def sqrt_alphas_cumprod_prev(n_timestep):
    betas = make_beta_schedule_linear(n_timestep)
    alphas_cumprod = np.cumprod(1.0 - betas, axis=0)
    return np.sqrt(np.append(1.0, alphas_cumprod))      # length n_timestep + 1


# ------------------------------- Pallas kernel -------------------------------
def _ddpm_loss_kernel(alpha_ref, x_ref, noise_ref, cond_ref,
                      w1t_ref, w2t_ref, b2_ref, out_ref):
    b = pl.program_id(0)                      # batch index

    # Per-batch q-sample scalars from the flat SMEM table [sa0, sb0, sa1, ...].
    sa = alpha_ref[2 * b]                     # sqrt(alpha_bar) sample
    sb = alpha_ref[2 * b + 1]                 # sqrt(1 - alpha_bar)

    # Channels-major tiles: (C, t_hw), lane-dense along the spatial axis.
    x = x_ref[...].astype(jnp.float32)
    noise = noise_ref[...].astype(jnp.float32)
    c = x.shape[0]

    # q-sample: x_noisy = sqrt_alpha * x + sqrt(1 - sqrt_alpha**2) * noise
    x_noisy = sa * x + sb * noise

    # Synthetic conditional denoiser (1x1-conv MLP + SiLU, time/text cond),
    # channels-major.  Input projection has K = C = 4: do it as C unrolled
    # broadcast-FMAs on the VPU (an MXU pass here would be ~97% padding).
    w1t = w1t_ref[...]                                     # (HID, C)
    h = cond_ref[...] + w1t[:, 0:1] * x_noisy[0:1, :]      # (HID, t_hw)
    for k in range(1, c):                                  # static unroll, C-1 FMAs
        h = h + w1t[:, k:k + 1] * x_noisy[k:k + 1, :]
    h = h * jax.nn.sigmoid(h)                              # SiLU (EUP)

    # Output projection: (C, HID) @ (HID, t_hw) -> K = HID = 128, real MXU shape.
    pred = jnp.dot(w2t_ref[...], h, preferred_element_type=jnp.float32)
    pred = pred + b2_ref[...]                              # (C, 1) broadcast

    # In-kernel L1 'sum' partial: sublane reduce (C -> 1), then one lane
    # reduce; write a tiny lane-dense (1, 128) partial for this (b, i) tile.
    diff = jnp.abs(noise - pred)
    part = jnp.sum(diff, axis=0, keepdims=True)            # (1, t_hw)
    total = jnp.sum(part, axis=1, keepdims=True)           # (1, 1)
    out_ref[...] = total + jnp.zeros((1, 128), dtype=jnp.float32)


# ------------------------------- call wrapper --------------------------------
def _pick_tile(hw, max_tile=2048):
    """Largest lane-dense spatial tile: multiple of 128 that divides hw."""
    if hw <= max_tile:
        return hw                               # full extent is always legal
    t = max_tile - (max_tile % 128)
    while t >= 128:
        if hw % t == 0:
            return t
        t -= 128
    # TODO(synk): no multiple-of-128 divisor of hw; fall back to one full tile.
    return hw


def diffusion_p_losses_pallas(alpha_flat, x_cm, noise_cm, cond_col,
                              w1t, w2t, b2_col, *, t_hw=None):
    b, c, hw = x_cm.shape
    hid = w1t.shape[0]
    if t_hw is None:
        t_hw = _pick_tile(hw)
    assert hw % t_hw == 0 and (t_hw == hw or t_hw % 128 == 0)
    n_tiles = hw // t_hw

    flops = 2 * b * hw * (c * hid + hid * c)
    bytes_accessed = (x_cm.dtype.itemsize * b * c * hw
                      + noise_cm.dtype.itemsize * b * c * hw
                      + 4 * (b * hid + 2 * c * hid + c
                             + b * n_tiles * 128 + 2 * b))
    cost = pl.CostEstimate(flops=flops, transcendentals=b * hw * hid,
                           bytes_accessed=bytes_accessed)

    partials = pl.pallas_call(
        _ddpm_loss_kernel,
        out_shape=jax.ShapeDtypeStruct((b, n_tiles, 1, 128), jnp.float32),
        grid_spec=pltpu.PrefetchScalarGridSpec(
            num_scalar_prefetch=0,
            grid=(b, n_tiles),
            in_specs=[
                # flat per-batch (sa, sb) scalars, whole array in SMEM
                pl.BlockSpec(memory_space=pltpu.MemorySpace.SMEM),
                pl.BlockSpec((None, c, t_hw), lambda bb, i: (bb, 0, i)),   # x
                pl.BlockSpec((None, c, t_hw), lambda bb, i: (bb, 0, i)),   # noise
                pl.BlockSpec((None, hid, 1), lambda bb, i: (bb, 0, 0)),    # cond(+b1)
                pl.BlockSpec((hid, c), lambda bb, i: (0, 0)),              # w1^T
                pl.BlockSpec((c, hid), lambda bb, i: (0, 0)),              # w2^T
                pl.BlockSpec((c, 1), lambda bb, i: (0, 0)),                # b2 column
            ],
            out_specs=pl.BlockSpec((None, None, 1, 128),
                                   lambda bb, i: (bb, i, 0, 0)),
        ),
        compiler_params=pltpu.CompilerParams(
            dimension_semantics=("parallel", "parallel")),
        cost_estimate=cost,
    )(alpha_flat, x_cm, noise_cm, cond_col, w1t, w2t, b2_col)

    # Tiny (B * n_tiles)-element reduction of the per-tile partial sums.
    return jnp.sum(partials[:, :, 0, 0])


@partial(jax.jit, static_argnames=("n_timestep", "t_hw"))
def run_diffusion_forward(x, txt, params, key, *, n_timestep, t_hw=None):
    """x: (B, C, H, W) float32 NCHW, txt: (B, SEQ, TXT_DIM) float32."""
    b, c, h, w = x.shape
    hw = h * w

    sacp = jnp.asarray(sqrt_alphas_cumprod_prev(n_timestep), dtype=jnp.float32)

    # Device-side replacements for the host np.random draws in p_losses.
    k_t, k_u, k_n = jax.random.split(key, 3)
    t = jax.random.randint(k_t, (), 1, n_timestep + 1)
    lo, hi = sacp[t - 1], sacp[t]
    u = jax.random.uniform(k_u, (b,), dtype=jnp.float32)
    sqrt_alpha = lo + (hi - lo) * u                                   # (B,)
    alpha_flat = jnp.stack(
        [sqrt_alpha, jnp.sqrt(1.0 - sqrt_alpha * sqrt_alpha)],
        axis=1).reshape(-1)                                           # (2B,)

    # Channels-major view of NCHW: free reshape, no transpose materialization.
    x_cm = x.reshape(b, c, hw)
    # Noise drawn on device, stored bf16 (cast fuses into the RNG producer).
    noise_cm = jax.random.normal(
        k_n, (b, c, hw), dtype=jnp.float32).astype(jnp.bfloat16)

    # Conditioning glue (tiny): pooled text + normalized timestep; b1 folded in.
    t_feat = jnp.full((b, 1), t.astype(jnp.float32) / n_timestep, jnp.float32)
    txt_pooled = jnp.mean(txt, axis=1)
    cond = t_feat @ params["wt"] + txt_pooled @ params["wtxt"] + params["b1"]

    loss = diffusion_p_losses_pallas(
        alpha_flat, x_cm, noise_cm, cond[:, :, None],
        params["w1"].T, params["w2"].T, params["b2"].reshape(-1, 1),
        t_hw=t_hw)
    return loss, (x_cm, noise_cm, sqrt_alpha, cond)


# ------------------------------- reference -----------------------------------
def reference_loss(x_cm, noise_cm, sqrt_alpha, cond, params):
    xf = x_cm.astype(jnp.float32)
    nf = noise_cm.astype(jnp.float32)
    sa = sqrt_alpha[:, None, None]
    x_noisy = sa * xf + jnp.sqrt(1.0 - sa * sa) * nf
    hpre = jnp.einsum("ch,bcn->bhn", params["w1"], x_noisy,
                      precision=lax.Precision.HIGHEST) + cond[:, :, None]
    hact = hpre * jax.nn.sigmoid(hpre)
    pred = jnp.einsum("hc,bhn->bcn", params["w2"], hact,
                      precision=lax.Precision.HIGHEST)
    pred = pred + params["b2"].reshape(1, -1, 1)
    return jnp.sum(jnp.abs(nf - pred))


if __name__ == "__main__":
    B, C, H, W = 2, 4, 16, 16
    SEQ, TXT_DIM, HID = 8, 32, 128
    N_TIMESTEP = 1000

    root = jax.random.PRNGKey(0)
    k_x, k_txt, k_p1, k_p2, k_p3, k_p4, k_fwd = jax.random.split(root, 7)

    x = jax.random.normal(k_x, (B, C, H, W), dtype=jnp.float32)
    txt = jax.random.normal(k_txt, (B, SEQ, TXT_DIM), dtype=jnp.float32)

    # Deterministic synthetic stand-in model parameters.
    params = {
        "w1": jax.random.normal(k_p1, (C, HID), jnp.float32) / math.sqrt(C),
        "b1": jnp.zeros((1, HID), jnp.float32),
        "w2": jax.random.normal(k_p2, (HID, C), jnp.float32) / math.sqrt(HID),
        "b2": jnp.zeros((1, C), jnp.float32),
        "wt": jax.random.normal(k_p3, (1, HID), jnp.float32) * 0.1,
        "wtxt": jax.random.normal(k_p4, (TXT_DIM, HID), jnp.float32)
                / math.sqrt(TXT_DIM),
    }

    loss, (x_cm, noise_cm, sqrt_alpha, cond) = run_diffusion_forward(
        x, txt, params, k_fwd, n_timestep=N_TIMESTEP)
    loss = jax.block_until_ready(loss)

    ref = jax.block_until_ready(
        reference_loss(x_cm, noise_cm, sqrt_alpha, cond, params))
    np.testing.assert_allclose(np.asarray(loss), np.asarray(ref),
                               rtol=2e-3, atol=1.0)

    # Also exercise the spatially tiled path (n_tiles > 1, same RNG -> same ref).
    loss_tiled, _ = run_diffusion_forward(
        x, txt, params, k_fwd, n_timestep=N_TIMESTEP, t_hw=128)
    loss_tiled = jax.block_until_ready(loss_tiled)
    np.testing.assert_allclose(np.asarray(loss_tiled), np.asarray(ref),
                               rtol=2e-3, atol=1.0)

    print("KERNEL_OK")
</pallas_src>

<mosaic_0001>
module attributes {stable_mosaic.version = 11 : i64} {
  func.func @_ddpm_loss_kernel(%arg0: i32, %arg1: i32, %arg2: memref<4xf32, #tpu.memory_space<smem>>, %arg3: memref<1x4x256xf32, #tpu.memory_space<vmem>>, %arg4: memref<1x4x256xbf16, #tpu.memory_space<vmem>>, %arg5: memref<1x128x1xf32, #tpu.memory_space<vmem>>, %arg6: memref<128x4xf32, #tpu.memory_space<vmem>>, %arg7: memref<4x128xf32, #tpu.memory_space<vmem>>, %arg8: memref<4x1xf32, #tpu.memory_space<vmem>>, %arg9: memref<1x1x1x128xf32, #tpu.memory_space<vmem>>) attributes {dimension_semantics = [#tpu.dimension_semantics<parallel>, #tpu.dimension_semantics<parallel>], iteration_bounds = array<i64: 2, 1>, scalar_prefetch = 0 : i64, scratch_operands = 0 : i64, tpu.core_type = #tpu.core_type<tc>, window_params = [{transform_indices = @transform_0, window_bounds = array<i64: 4>}, {transform_indices = @transform_1, window_bounds = array<i64: 1, 4, 256>}, {transform_indices = @transform_2, window_bounds = array<i64: 1, 4, 256>}, {transform_indices = @transform_3, window_bounds = array<i64: 1, 128, 1>}, {pipeline_mode = #tpu.pipeline_mode<synchronous>, transform_indices = @transform_4, window_bounds = array<i64: 128, 4>}, {pipeline_mode = #tpu.pipeline_mode<synchronous>, transform_indices = @transform_5, window_bounds = array<i64: 4, 128>}, {pipeline_mode = #tpu.pipeline_mode<synchronous>, transform_indices = @transform_6, window_bounds = array<i64: 4, 1>}, {transform_indices = @transform_7, window_bounds = array<i64: 1, 1, 1, 128>}]} {
    %c2_i32 = arith.constant 2 : i32
    %0 = arith.muli %c2_i32, %arg0 : i32
    %1 = arith.index_cast %0 : i32 to index
    %2 = memref.load %arg2[%1] : memref<4xf32, #tpu.memory_space<smem>>
    %c2_i32_0 = arith.constant 2 : i32
    %3 = arith.muli %c2_i32_0, %arg0 : i32
    %c1_i32 = arith.constant 1 : i32
    %4 = arith.addi %3, %c1_i32 : i32
    %5 = arith.index_cast %4 : i32 to index
    %6 = memref.load %arg2[%5] : memref<4xf32, #tpu.memory_space<smem>>
    %c0 = arith.constant 0 : index
    %c0_1 = arith.constant 0 : index
    %c0_2 = arith.constant 0 : index
    %7 = vector.load %arg3[%c0, %c0_1, %c0_2] : memref<1x4x256xf32, #tpu.memory_space<vmem>>, vector<1x4x256xf32>
    %8 = vector.shape_cast %7 : vector<1x4x256xf32> to vector<4x256xf32>
    %c0_3 = arith.constant 0 : index
    %c0_4 = arith.constant 0 : index
    %c0_5 = arith.constant 0 : index
    %9 = vector.load %arg4[%c0_3, %c0_4, %c0_5] : memref<1x4x256xbf16, #tpu.memory_space<vmem>>, vector<1x4x256xbf16>
    %10 = vector.shape_cast %9 : vector<1x4x256xbf16> to vector<4x256xbf16>
    %11 = arith.extf %10 : vector<4x256xbf16> to vector<4x256xf32>
    %12 = vector.broadcast %2 : f32 to vector<4x256xf32>
    %13 = arith.mulf %12, %8 : vector<4x256xf32>
    %14 = vector.broadcast %6 : f32 to vector<4x256xf32>
    %15 = arith.mulf %14, %11 : vector<4x256xf32>
    %16 = arith.addf %13, %15 : vector<4x256xf32>
    %c0_6 = arith.constant 0 : index
    %c0_7 = arith.constant 0 : index
    %17 = vector.load %arg6[%c0_6, %c0_7] : memref<128x4xf32, #tpu.memory_space<vmem>>, vector<128x4xf32>
    %c0_8 = arith.constant 0 : index
    %c0_9 = arith.constant 0 : index
    %c0_10 = arith.constant 0 : index
    %18 = vector.load %arg5[%c0_8, %c0_9, %c0_10] : memref<1x128x1xf32, #tpu.memory_space<vmem>>, vector<1x128x1xf32>
    %19 = vector.shape_cast %18 : vector<1x128x1xf32> to vector<128x1xf32>
    %20 = vector.extract_strided_slice %17 {offsets = [0, 0], sizes = [128, 1], strides = [1, 1]} : vector<128x4xf32> to vector<128x1xf32>
    %21 = vector.extract_strided_slice %16 {offsets = [0, 0], sizes = [1, 256], strides = [1, 1]} : vector<4x256xf32> to vector<1x256xf32>
    %22 = vector.broadcast %20 : vector<128x1xf32> to vector<128x256xf32>
    %23 = vector.broadcast %21 : vector<1x256xf32> to vector<128x256xf32>
    %24 = arith.mulf %22, %23 : vector<128x256xf32>
    %25 = vector.broadcast %19 : vector<128x1xf32> to vector<128x256xf32>
    %26 = arith.addf %25, %24 : vector<128x256xf32>
    %27 = vector.extract_strided_slice %17 {offsets = [0, 1], sizes = [128, 1], strides = [1, 1]} : vector<128x4xf32> to vector<128x1xf32>
    %28 = vector.extract_strided_slice %16 {offsets = [1, 0], sizes = [1, 256], strides = [1, 1]} : vector<4x256xf32> to vector<1x256xf32>
    %29 = vector.broadcast %27 : vector<128x1xf32> to vector<128x256xf32>
    %30 = vector.broadcast %28 : vector<1x256xf32> to vector<128x256xf32>
    %31 = arith.mulf %29, %30 : vector<128x256xf32>
    %32 = arith.addf %26, %31 : vector<128x256xf32>
    %33 = vector.extract_strided_slice %17 {offsets = [0, 2], sizes = [128, 1], strides = [1, 1]} : vector<128x4xf32> to vector<128x1xf32>
    %34 = vector.extract_strided_slice %16 {offsets = [2, 0], sizes = [1, 256], strides = [1, 1]} : vector<4x256xf32> to vector<1x256xf32>
    %35 = vector.broadcast %33 : vector<128x1xf32> to vector<128x256xf32>
    %36 = vector.broadcast %34 : vector<1x256xf32> to vector<128x256xf32>
    %37 = arith.mulf %35, %36 : vector<128x256xf32>
    %38 = arith.addf %32, %37 : vector<128x256xf32>
    %39 = vector.extract_strided_slice %17 {offsets = [0, 3], sizes = [128, 1], strides = [1, 1]} : vector<128x4xf32> to vector<128x1xf32>
    %40 = vector.extract_strided_slice %16 {offsets = [3, 0], sizes = [1, 256], strides = [1, 1]} : vector<4x256xf32> to vector<1x256xf32>
    %41 = vector.broadcast %39 : vector<128x1xf32> to vector<128x256xf32>
    %42 = vector.broadcast %40 : vector<1x256xf32> to vector<128x256xf32>
    %43 = arith.mulf %41, %42 : vector<128x256xf32>
    %44 = arith.addf %38, %43 : vector<128x256xf32>
    %45 = arith.negf %44 : vector<128x256xf32>
    %46 = math.exp %45 : vector<128x256xf32>
    %cst = arith.constant 1.000000e+00 : f32
    %47 = vector.broadcast %cst : f32 to vector<128x256xf32>
    %48 = arith.addf %47, %46 : vector<128x256xf32>
    %49 = arith.divf %47, %48 : vector<128x256xf32>
    %50 = arith.mulf %44, %49 : vector<128x256xf32>
    %c0_11 = arith.constant 0 : index
    %c0_12 = arith.constant 0 : index
    %51 = vector.load %arg7[%c0_11, %c0_12] : memref<4x128xf32, #tpu.memory_space<vmem>>, vector<4x128xf32>
    %cst_13 = arith.constant dense<0.000000e+00> : vector<4x256xf32>
    %52 = tpu.matmul %51, %50, %cst_13 {dimension_numbers = #tpu.dot_dimension_numbers<[1], [0], [0], [1], [0, 0, 1, 1], [], []>} : vector<4x128xf32>, vector<128x256xf32>, vector<4x256xf32> -> vector<4x256xf32>
    %c0_14 = arith.constant 0 : index
    %c0_15 = arith.constant 0 : index
    %53 = vector.load %arg8[%c0_14, %c0_15] : memref<4x1xf32, #tpu.memory_space<vmem>>, vector<4x1xf32>
    %54 = vector.broadcast %53 : vector<4x1xf32> to vector<4x256xf32>
    %55 = arith.addf %52, %54 : vector<4x256xf32>
    %56 = arith.subf %11, %55 : vector<4x256xf32>
    %57 = math.absf %56 : vector<4x256xf32>
    %cst_16 = arith.constant dense<0.000000e+00> : vector<256xf32>
    %58 = vector.multi_reduction <add>, %57, %cst_16 [0] : vector<4x256xf32> to vector<256xf32>
    %59 = vector.shape_cast %58 : vector<256xf32> to vector<1x256xf32>
    %cst_17 = arith.constant dense<0.000000e+00> : vector<1xf32>
    %60 = vector.multi_reduction <add>, %59, %cst_17 [1] : vector<1x256xf32> to vector<1xf32>
    %61 = vector.shape_cast %60 : vector<1xf32> to vector<1x1xf32>
    %cst_18 = arith.constant 0.000000e+00 : f32
    %62 = vector.broadcast %cst_18 : f32 to vector<1x128xf32>
    %63 = vector.broadcast %61 : vector<1x1xf32> to vector<1x128xf32>
    %64 = arith.addf %63, %62 : vector<1x128xf32>
    %c0_19 = arith.constant 0 : index
    %c0_20 = arith.constant 0 : index
    %c0_21 = arith.constant 0 : index
    %c0_22 = arith.constant 0 : index
    %65 = vector.load %arg9[%c0_19, %c0_20, %c0_21, %c0_22] : memref<1x1x1x128xf32, #tpu.memory_space<vmem>>, vector<1x1x1x128xf32>
    %66 = vector.shape_cast %65 : vector<1x1x1x128xf32> to vector<1x128xf32>
    %67 = vector.shape_cast %64 : vector<1x128xf32> to vector<1x1x1x128xf32>
    tpu.vector_store %arg9[%c0_19, %c0_20, %c0_21, %c0_22], %67 {strides = array<i32>} : memref<1x1x1x128xf32, #tpu.memory_space<vmem>>, vector<1x1x1x128xf32>,
    return
  }
  func.func @transform_0(%arg0: i32, %arg1: i32) -> i32 {
    %c0_i32 = arith.constant 0 : i32
    %c0_i32_0 = arith.constant 0 : i32
    return %c0_i32 : i32
  }
  func.func @transform_1(%arg0: i32, %arg1: i32) -> (i32, i32, i32) {
    %c0_i32 = arith.constant 0 : i32
    %c0_i32_0 = arith.constant 0 : i32
    return %arg0, %c0_i32, %arg1 : i32, i32, i32
  }
  func.func @transform_2(%arg0: i32, %arg1: i32) -> (i32, i32, i32) {
    %c0_i32 = arith.constant 0 : i32
    %c0_i32_0 = arith.constant 0 : i32
    return %arg0, %c0_i32, %arg1 : i32, i32, i32
  }
  func.func @transform_3(%arg0: i32, %arg1: i32) -> (i32, i32, i32) {
    %c0_i32 = arith.constant 0 : i32
    %c0_i32_0 = arith.constant 0 : i32
    %c0_i32_1 = arith.constant 0 : i32
    return %arg0, %c0_i32, %c0_i32_0 : i32, i32, i32
  }
  func.func @transform_4(%arg0: i32, %arg1: i32) -> (i32, i32) {
    %c0_i32 = arith.constant 0 : i32
    %c0_i32_0 = arith.constant 0 : i32
    %c0_i32_1 = arith.constant 0 : i32
    return %c0_i32, %c0_i32_0 : i32, i32
  }
  func.func @transform_5(%arg0: i32, %arg1: i32) -> (i32, i32) {
    %c0_i32 = arith.constant 0 : i32
    %c0_i32_0 = arith.constant 0 : i32
    %c0_i32_1 = arith.constant 0 : i32
    return %c0_i32, %c0_i32_0 : i32, i32
  }
  func.func @transform_6(%arg0: i32, %arg1: i32) -> (i32, i32) {
    %c0_i32 = arith.constant 0 : i32
    %c0_i32_0 = arith.constant 0 : i32
    %c0_i32_1 = arith.constant 0 : i32
    return %c0_i32, %c0_i32_0 : i32, i32
  }
  func.func @transform_7(%arg0: i32, %arg1: i32) -> (i32, i32, i32, i32) {
    %c0_i32 = arith.constant 0 : i32
    %c0_i32_0 = arith.constant 0 : i32
    %c0_i32_1 = arith.constant 0 : i32
    return %arg0, %arg1, %c0_i32, %c0_i32_0 : i32, i32, i32, i32
  }
}

</mosaic_0001>

<llo_original>
// kernel: run_diffusion_forward.3
$region0: #{run_diffusion_forward.3}
  #allocation0 [shape = 'u32[]', space=smem, size = 0x4, offset = 0x4, fixed_abs, tag = 'smem constant byte address 0x4 - core index']
  #allocation1 [shape = 'u32[72,128]{1,0:T(1,128)}', space=vmem, size = 0x9000, scoped, tag = 'internal scratch']
  %s0 = inlined_call_operand.vmem [shape: f32[4], index: 0, kind: input, shape index: {}]
  %s1 = inlined_call_operand.vmem [shape: f32[2,4,256], index: 1, kind: input, shape index: {}]
  %s2 = inlined_call_operand.vmem [shape: bf16[2,4,256], index: 2, kind: input, shape index: {}]
  %s3 = inlined_call_operand.vmem [shape: f32[2,128,1], index: 3, kind: input, shape index: {}]
  %s4 = inlined_call_operand.vmem [shape: f32[128,4], index: 4, kind: input, shape index: {}]
  %s5 = inlined_call_operand.vmem [shape: f32[4,128], index: 5, kind: input, shape index: {}]
  %s6 = inlined_call_operand.vmem [shape: f32[4,1], index: 6, kind: input, shape index: {}]
  %s7 = inlined_call_operand.vmem [shape: f32[2,1,1,128], index: 7, kind: output, shape index: {}]
  %s8 = sld [smem:[#allocation0]]
  $region65: #{run_diffusion_forward.3} parent=0
    _
  %s10 = ssub.s32 1, %s8
  %s11 = scalar_select 0, %s10, %s8
  $region1: #{run_diffusion_forward.3} parent=0
    #allocation2 [shape = 'u8[512]{0}', space=smem, size = 0x200, scoped, tag = 'input window, operand 0, single buffered']
    #allocation3 [shape = 's32[2]{0}', space=sflag, size = 0x8, scoped, tag = 'scoped memory for run_diffusion_forward.3']
    %12 = vsyncpa [#allocation3], 0
    loop: start=0, step=1, limit=4
    $region2: #{run_diffusion_forward.3} parent=1 // loop_pre_header
      _
    $region3: #{run_diffusion_forward.3} parent=1 // loop_header
      %s14 = sphi 0, %s18
      %p15 = scmp.ge.s32.totalorder %s14, 4
      %s21 = sphi 0, %s33
      %s22 = sphi 0, %s29
      %s23 = sphi 0, %s21
      %s24 = sphi 0, %s22
      %s25 = sphi 0, %s23
      %s26 = sphi 0, %s24
      %s34 = sphi 0, %s34
      %s36 = sphi 0, %s34
      %s37 = sphi 0, %s36
      %s51 = sphi 0, %s37
      %s59 = sphi 0, %s61
      %s62 = sphi 0, %s59
      %s63 = sphi 0, %s62
      %s79 = sphi 0, %s63
      %s87 = sphi 0, %s89
      %s90 = sphi 0, %s87
      %s91 = sphi 0, %s90
      %s107 = sphi 0, %s91
      %s113 = sphi 0, %s115
      %s116 = sphi 0, %s113
      %s117 = sphi 0, %s116
      %s133 = sphi 0, %s117
      %s137 = sphi 0, %s137
      %s139 = sphi 0, %s137
      %s140 = sphi 0, %s139
      %s154 = sphi 0, %s140
      %s158 = sphi 0, %s158
      %s160 = sphi 0, %s158
      %s161 = sphi 0, %s160
      %s175 = sphi 0, %s161
      %s179 = sphi 0, %s179
      %s181 = sphi 0, %s179
      %s182 = sphi 0, %s181
      %s196 = sphi 0, %s182
      %s204 = sphi 0, %s206
      %s207 = sphi 0, %s204
      %s208 = sphi 0, %s207
      %s224 = sphi 0, %s208
    $region4: #{run_diffusion_forward.3} parent=1 // loop_header_branch
      %17 = sbr.rel (%p15) target = $region8
    $region5: #{run_diffusion_forward.3} parent=1 // loop_body
      %s19 = ssub.s32 %s14, 1
      %s20 = ssub.s32 %s14, 2
      %s27 = sadd.s32 1, %s22
      %p28 = scmp.ge.s32.totalorder %s27, 1
      %s29 = scalar_select %p28, 0, %s27
      %s30 = sadd.s32 1, %s21
      %s31 = scalar_select %p28, %s30, %s21
      %p32 = scmp.ge.s32.totalorder %s31, 2
      %s33 = scalar_select %p32, 0, %s31
      %s35 = sadd.s32 %s34, 1
      %p38 = scmp.eq.s32.totalorder %s14, 1
      %p39 = scmp.ne.s32.totalorder %s34, %s36
      %p40 = scmp.eq.s32.totalorder %s14, 0
      %p41 = por %p39, %p40
      %p42 = scmp.ne.s32.totalorder %s34, %s36
      %p43 = scmp.eq.s32.totalorder %s19, 1
      %p44 = por %p42, %p43
      %p45 = scmp.ne.s32.totalorder %s36, %s37
      %p46 = scmp.eq.s32.totalorder %s19, 0
      %p47 = por %p45, %p46
      %p48 = scmp.ne.s32.totalorder %s36, %s37
      %p49 = scmp.eq.s32.totalorder %s20, 1
      %p50 = por %p48, %p49
      %p52 = scmp.ne.s32.totalorder %s37, %s51
      %p53 = scmp.eq.s32.totalorder %s20, 0
      %p54 = por %p52, %p53
      %s55 = ssub.s32 %s21, %s33
      %s56 = ssub.s32 %s22, %s29
      %s57 = sor.u32 %s55, %s56
      %p58 = scmp.eq.s32.totalorder %s57, 0
      %s60 = sadd.s32 %s59, 1
      %s61 = scalar_select %p58, %s59, %s60
      %p64 = pneg %p58
      %p65 = scmp.eq.s32.totalorder %s14, 1
      %p66 = por %p64, %p65
      %p67 = scmp.ne.s32.totalorder %s59, %s62
      %p68 = scmp.eq.s32.totalorder %s14, 0
      %p69 = por %p67, %p68
      %p70 = scmp.ne.s32.totalorder %s59, %s62
      %p71 = scmp.eq.s32.totalorder %s19, 1
      %p72 = por %p70, %p71
      %p73 = scmp.ne.s32.totalorder %s62, %s63
      %p74 = scmp.eq.s32.totalorder %s19, 0
      %p75 = por %p73, %p74
      %p76 = scmp.ne.s32.totalorder %s62, %s63
      %p77 = scmp.eq.s32.totalorder %s20, 1
      %p78 = por %p76, %p77
      %p80 = scmp.ne.s32.totalorder %s63, %s79
      %p81 = scmp.eq.s32.totalorder %s20, 0
      %p82 = por %p80, %p81
      %s83 = ssub.s32 %s21, %s33
      %s84 = ssub.s32 %s22, %s29
      %s85 = sor.u32 %s83, %s84
      %p86 = scmp.eq.s32.totalorder %s85, 0
      %s88 = sadd.s32 %s87, 1
      %s89 = scalar_select %p86, %s87, %s88
      %p92 = pneg %p86
      %p93 = scmp.eq.s32.totalorder %s14, 1
      %p94 = por %p92, %p93
      %p95 = scmp.ne.s32.totalorder %s87, %s90
      %p96 = scmp.eq.s32.totalorder %s14, 0
      %p97 = por %p95, %p96
      %p98 = scmp.ne.s32.totalorder %s87, %s90
      %p99 = scmp.eq.s32.totalorder %s19, 1
      %p100 = por %p98, %p99
      %p101 = scmp.ne.s32.totalorder %s90, %s91
      %p102 = scmp.eq.s32.totalorder %s19, 0
      %p103 = por %p101, %p102
      %p104 = scmp.ne.s32.totalorder %s90, %s91
      %p105 = scmp.eq.s32.totalorder %s20, 1
      %p106 = por %p104, %p105
      %p108 = scmp.ne.s32.totalorder %s91, %s107
      %p109 = scmp.eq.s32.totalorder %s20, 0
      %p110 = por %p108, %p109
      %s111 = ssub.s32 %s21, %s33
      %p112 = scmp.eq.s32.totalorder %s111, 0
      %s114 = sadd.s32 %s113, 1
      %s115 = scalar_select %p112, %s113, %s114
      %p118 = pneg %p112
      %p119 = scmp.eq.s32.totalorder %s14, 1
      %p120 = por %p118, %p119
      %p121 = scmp.ne.s32.totalorder %s113, %s116
      %p122 = scmp.eq.s32.totalorder %s14, 0
      %p123 = por %p121, %p122
      %p124 = scmp.ne.s32.totalorder %s113, %s116
      %p125 = scmp.eq.s32.totalorder %s19, 1
      %p126 = por %p124, %p125
      %p127 = scmp.ne.s32.totalorder %s116, %s117
      %p128 = scmp.eq.s32.totalorder %s19, 0
      %p129 = por %p127, %p128
      %p130 = scmp.ne.s32.totalorder %s116, %s117
      %p131 = scmp.eq.s32.totalorder %s20, 1
      %p132 = por %p130, %p131
      %p134 = scmp.ne.s32.totalorder %s117, %s133
      %p135 = scmp.eq.s32.totalorder %s20, 0
      %p136 = por %p134, %p135
      %s138 = sadd.s32 %s137, 1
      %p141 = scmp.eq.s32.totalorder %s14, 1
      %p142 = scmp.ne.s32.totalorder %s137, %s139
      %p143 = scmp.eq.s32.totalorder %s14, 0
      %p144 = por %p142, %p143
      %p145 = scmp.ne.s32.totalorder %s137, %s139
      %p146 = scmp.eq.s32.totalorder %s19, 1
      %p147 = por %p145, %p146
      %p148 = scmp.ne.s32.totalorder %s139, %s140
      %p149 = scmp.eq.s32.totalorder %s19, 0
      %p150 = por %p148, %p149
      %p151 = scmp.ne.s32.totalorder %s139, %s140
      %p152 = scmp.eq.s32.totalorder %s20, 1
      %p153 = por %p151, %p152
      %p155 = scmp.ne.s32.totalorder %s140, %s154
      %p156 = scmp.eq.s32.totalorder %s20, 0
      %p157 = por %p155, %p156
      %s159 = sadd.s32 %s158, 1
      %p162 = scmp.eq.s32.totalorder %s14, 1
      %p163 = scmp.ne.s32.totalorder %s158, %s160
      %p164 = scmp.eq.s32.totalorder %s14, 0
      %p165 = por %p163, %p164
      %p166 = scmp.ne.s32.totalorder %s158, %s160
      %p167 = scmp.eq.s32.totalorder %s19, 1
      %p168 = por %p166, %p167
      %p169 = scmp.ne.s32.totalorder %s160, %s161
      %p170 = scmp.eq.s32.totalorder %s19, 0
      %p171 = por %p169, %p170
      %p172 = scmp.ne.s32.totalorder %s160, %s161
      %p173 = scmp.eq.s32.totalorder %s20, 1
      %p174 = por %p172, %p173
      %p176 = scmp.ne.s32.totalorder %s161, %s175
      %p177 = scmp.eq.s32.totalorder %s20, 0
      %p178 = por %p176, %p177
      %s180 = sadd.s32 %s179, 1
      %p183 = scmp.eq.s32.totalorder %s14, 1
      %p184 = scmp.ne.s32.totalorder %s179, %s181
      %p185 = scmp.eq.s32.totalorder %s14, 0
      %p186 = por %p184, %p185
      %p187 = scmp.ne.s32.totalorder %s179, %s181
      %p188 = scmp.eq.s32.totalorder %s19, 1
      %p189 = por %p187, %p188
      %p190 = scmp.ne.s32.totalorder %s181, %s182
      %p191 = scmp.eq.s32.totalorder %s19, 0
      %p192 = por %p190, %p191
      %p193 = scmp.ne.s32.totalorder %s181, %s182
      %p194 = scmp.eq.s32.totalorder %s20, 1
      %p195 = por %p193, %p194
      %p197 = scmp.ne.s32.totalorder %s182, %s196
      %p198 = scmp.eq.s32.totalorder %s20, 0
      %p199 = por %p197, %p198
      %s200 = ssub.s32 %s21, %s33
      %s201 = ssub.s32 %s22, %s29
      %s202 = sor.u32 %s200, %s201
      %p203 = scmp.eq.s32.totalorder %s202, 0
      %s205 = sadd.s32 %s204, 1
      %s206 = scalar_select %p203, %s204, %s205
      %p209 = pneg %p203
      %p210 = scmp.eq.s32.totalorder %s14, 1
      %p211 = por %p209, %p210
      %p212 = scmp.ne.s32.totalorder %s204, %s207
      %p213 = scmp.eq.s32.totalorder %s14, 0
      %p214 = por %p212, %p213
      %p215 = scmp.ne.s32.totalorder %s204, %s207
      %p216 = scmp.eq.s32.totalorder %s19, 1
      %p217 = por %p215, %p216
      %p218 = scmp.ne.s32.totalorder %s207, %s208
      %p219 = scmp.eq.s32.totalorder %s19, 0
      %p220 = por %p218, %p219
      %p221 = scmp.ne.s32.totalorder %s207, %s208
      %p222 = scmp.eq.s32.totalorder %s20, 1
      %p223 = por %p221, %p222
      %p225 = scmp.ne.s32.totalorder %s208, %s224
      %p226 = scmp.eq.s32.totalorder %s20, 0
      %p227 = por %p225, %p226
      %p228 = scmp.le.s32.totalorder 1, %s14
      %p229 = scmp.lt.s32.totalorder %s14, 3
      %p230 = pnand %p228, %p229
      %p231 = pneg %p230
      // Predicated region
      $region9: #{run_diffusion_forward.3} parent=5 // pred_check
        _
      $region10: #{run_diffusion_forward.3} parent=5 // pred_check_branch
        %233 = sbr.rel (%p230) target = $region12
      $region11: #{run_diffusion_forward.3} parent=5 // pred_region
        %s234 = ssub.s32 %s14, 1
        // Predicated region
        $region13: #{run_diffusion_forward.3} parent=11 // pred_check
          %p235 = pneg %p47
        $region14: #{run_diffusion_forward.3} parent=11 // pred_check_branch
          %237 = sbr.rel (%p235) target = $region16
        $region15: #{run_diffusion_forward.3} parent=11 // pred_region
          %239 = vsyncadd [#allocation3], 0
          %s241 = sshll.u32 %s0, 4
          %s242 = int_to_ptr.vmem [resolvable:$true] %s241
          %244 = dma.vmem_to_smem %s242, 16, [#allocation2], [#allocation3]
        $region16: #{run_diffusion_forward.3} parent=11 // pred_fallthru
          _
        // Predicated region
        $region17: #{run_diffusion_forward.3} parent=11 // pred_check
          %p245 = pneg %p150
        $region18: #{run_diffusion_forward.3} parent=11 // pred_check_branch
          %247 = sbr.rel (%p245) target = $region20
        $region19: #{run_diffusion_forward.3} parent=11 // pred_region
          _
        $region20: #{run_diffusion_forward.3} parent=11 // pred_fallthru
          _
        // Predicated region
        $region21: #{run_diffusion_forward.3} parent=11 // pred_check
          %p248 = pneg %p171
        $region22: #{run_diffusion_forward.3} parent=11 // pred_check_branch
          %250 = sbr.rel (%p248) target = $region24
        $region23: #{run_diffusion_forward.3} parent=11 // pred_region
          _
        $region24: #{run_diffusion_forward.3} parent=11 // pred_fallthru
          _
        // Predicated region
        $region25: #{run_diffusion_forward.3} parent=11 // pred_check
          %p251 = pneg %p192
        $region26: #{run_diffusion_forward.3} parent=11 // pred_check_branch
          %253 = sbr.rel (%p251) target = $region28
        $region27: #{run_diffusion_forward.3} parent=11 // pred_region
          _
        $region28: #{run_diffusion_forward.3} parent=11 // pred_fallthru
          _
      $region12: #{run_diffusion_forward.3} parent=5 // pred_fallthru
        _
      %p254 = scmp.lt.s32.totalorder %s14, 2
      // Predicated region
      $region29: #{run_diffusion_forward.3} parent=5 // pred_check
        %p255 = pneg %p254
      $region30: #{run_diffusion_forward.3} parent=5 // pred_check_branch
        %257 = sbr.rel (%p255) target = $region32
      $region31: #{run_diffusion_forward.3} parent=5 // pred_region
        // Predicated region
        $region33: #{run_diffusion_forward.3} parent=31 // pred_check
          %p258 = pneg %p69
        $region34: #{run_diffusion_forward.3} parent=31 // pred_check_branch
          %260 = sbr.rel (%p258) target = $region36
        $region35: #{run_diffusion_forward.3} parent=31 // pred_region
          %s261 = smul.u32 2, %s22
          %p262 = scmp.lt.s32.totalorder %s21, 1
          %s263 = scalar_select %p262, %s21, 1
          %p264 = scmp.lt.s32.totalorder %s261, 1
          %s265 = scalar_select %p264, %s261, 1
          %s266 = smul.addr %s263, 2
          %s267 = sadd.s32 %s265, %s266
          %s268 = smul.addr %s267, 4
          %s269 = scalar_lea.vmem %s1, %s268
          %s270 = smul.u32 2, %s22
        $region36: #{run_diffusion_forward.3} parent=31 // pred_fallthru
          _
        // Predicated region
        $region37: #{run_diffusion_forward.3} parent=31 // pred_check
          %p271 = pneg %p97
        $region38: #{run_diffusion_forward.3} parent=31 // pred_check_branch
          %273 = sbr.rel (%p271) target = $region40
        $region39: #{run_diffusion_forward.3} parent=31 // pred_region
          %s274 = smul.u32 2, %s22
          %p275 = scmp.lt.s32.totalorder %s21, 1
          %s276 = scalar_select %p275, %s21, 1
          %p277 = scmp.lt.s32.totalorder %s274, 1
          %s278 = scalar_select %p277, %s274, 1
          %s279 = smul.addr %s276, 2
          %s280 = sadd.s32 %s278, %s279
          %s281 = smul.addr %s280, 2
          %s282 = scalar_lea.vmem %s2, %s281
          %s283 = smul.u32 2, %s22
        $region40: #{run_diffusion_forward.3} parent=31 // pred_fallthru
          _
        // Predicated region
        $region41: #{run_diffusion_forward.3} parent=31 // pred_check
          %p284 = pneg %p123
        $region42: #{run_diffusion_forward.3} parent=31 // pred_check_branch
          %286 = sbr.rel (%p284) target = $region44
        $region43: #{run_diffusion_forward.3} parent=31 // pred_region
          %p287 = scmp.lt.s32.totalorder %s21, 1
          %s288 = scalar_select %p287, %s21, 1
          %s289 = smul.addr %s288, 16
          %s290 = smul.addr %s289, 8
          %s291 = scalar_lea.vmem %s3, %s290
        $region44: #{run_diffusion_forward.3} parent=31 // pred_fallthru
          _
      $region32: #{run_diffusion_forward.3} parent=5 // pred_fallthru
        _
      %p292 = scmp.le.s32.totalorder 1, %s14
      %p293 = scmp.lt.s32.totalorder %s14, 3
      %p294 = pnand %p292, %p293
      %p295 = pneg %p294
      // Predicated region
      $region45: #{run_diffusion_forward.3} parent=5 // pred_check
        _
      $region46: #{run_diffusion_forward.3} parent=5 // pred_check_branch
        %297 = sbr.rel (%p294) target = $region48
      $region47: #{run_diffusion_forward.3} parent=5 // pred_region
        %s298 = ssub.s32 %s14, 1
        // Predicated region
        $region49: #{run_diffusion_forward.3} parent=47 // pred_check
          %p299 = pneg %p47
        $region50: #{run_diffusion_forward.3} parent=47 // pred_check_branch
          %301 = sbr.rel (%p299) target = $region52
        $region51: #{run_diffusion_forward.3} parent=47 // pred_region
          %303 = dma.done [#allocation3], 16
        $region52: #{run_diffusion_forward.3} parent=47 // pred_fallthru
          _
        %304 = sfence
        %p305 = pneg %p47
        %p306 = pneg %p44
        %s307 = smul.u32 2, %s24
        %p308 = scmp.lt.s32.totalorder %s23, 1
        %s309 = scalar_select %p308, %s23, 1
        %p310 = scmp.lt.s32.totalorder %s307, 1
        %s311 = scalar_select %p310, %s307, 1
        %s312 = smul.addr %s309, 2
        %s313 = sadd.s32 %s311, %s312
        %s314 = smul.addr %s313, 4
        %s315 = scalar_lea.vmem %s1, %s314
        %p316 = pneg %p75
        %p317 = pneg %p72
        %s318 = smul.u32 2, %s24
        %p319 = scmp.lt.s32.totalorder %s23, 1
        %s320 = scalar_select %p319, %s23, 1
        %p321 = scmp.lt.s32.totalorder %s318, 1
        %s322 = scalar_select %p321, %s318, 1
        %s323 = smul.addr %s320, 2
        %s324 = sadd.s32 %s322, %s323
        %s325 = smul.addr %s324, 2
        %s326 = scalar_lea.vmem %s2, %s325
        %p327 = pneg %p103
        %p328 = pneg %p100
        %p329 = scmp.lt.s32.totalorder %s23, 1
        %s330 = scalar_select %p329, %s23, 1
        %s331 = smul.addr %s330, 16
        %s332 = smul.addr %s331, 8
        %s333 = scalar_lea.vmem %s3, %s332
        %p334 = pneg %p129
        %p335 = pneg %p126
        %p336 = pneg %p150
        %p337 = pneg %p147
        %p338 = pneg %p171
        %p339 = pneg %p168
        %p340 = pneg %p192
        %p341 = pneg %p189
        %p342 = pneg %p220
        %p343 = pneg %p217
        %p344 = scmp.lt.s32.totalorder %s23, 1
        %s345 = scalar_select %p344, %s23, 1
        %p346 = scmp.lt.s32.totalorder %s24, 0
        %s347 = scalar_select %p346, %s24, 0
        %s348 = sadd.s32 %s347, %s345
        %s349 = scalar_lea.vmem %s7, %s348
        %s350 = smul.u32 2, %s24
        %p351 = scmp.lt.s32.totalorder %s23, 1
        %s352 = scalar_select %p351, %s23, 1
        %p353 = scmp.lt.s32.totalorder %s350, 1
        %s354 = scalar_select %p353, %s350, 1
        %s355 = smul.addr %s352, 2
        %s356 = sadd.s32 %s354, %s355
        %s357 = smul.addr %s356, 4
        %s358 = scalar_lea.vmem %s1, %s357
        %s359 = smul.u32 2, %s24
        %s360 = smul.u32 2, %s24
        %p361 = scmp.lt.s32.totalorder %s23, 1
        %s362 = scalar_select %p361, %s23, 1
        %p363 = scmp.lt.s32.totalorder %s360, 1
        %s364 = scalar_select %p363, %s360, 1
        %s365 = smul.addr %s362, 2
        %s366 = sadd.s32 %s364, %s365
        %s367 = smul.addr %s366, 2
        %s368 = scalar_lea.vmem %s2, %s367
        %s369 = smul.u32 2, %s24
        %p370 = scmp.lt.s32.totalorder %s23, 1
        %s371 = scalar_select %p370, %s23, 1
        %s372 = smul.addr %s371, 16
        %s373 = smul.addr %s372, 8
        %s374 = scalar_lea.vmem %s3, %s373
        %p375 = scmp.lt.s32.totalorder %s23, 1
        %s376 = scalar_select %p375, %s23, 1
        %p377 = scmp.lt.s32.totalorder %s24, 0
        %s378 = scalar_select %p377, %s24, 0
        %s379 = sadd.s32 %s378, %s376
        %s380 = scalar_lea.vmem %s7, %s379
        %s381 = smul.u32 %s23, 2
        %s382 = sld [smem:[#allocation2 + %s381]]
        %s383 = sadd.s32 %s381, 1
        %s384 = sld [smem:[#allocation2 + %s383]]
        %v385 = vld [vmem:[%s358] sm:$0xff]
        %v386 = vld [vmem:[%s368] sm:$0xf]
        %v387 = vunpack.c.l.bf16 %v386
        %v388 = vstv %s382
        %v389 = vmul.f32 %v388, %v385
        %v390 = vstv %s384
        %v391 = vmul.f32 %v390, %v387
        %v392 = vadd.f32 %v389, %v391
        %v393 = vld [vmem:[%s4] sm:$0xff]
        %v394 = vld [vmem:[%s4 + $0x8] sm:$0xff]
        %v395 = vld [vmem:[%s4 + $0x10] sm:$0xff]
        %v396 = vld [vmem:[%s4 + $0x18] sm:$0xff]
        %v397 = vld [vmem:[%s4 + $0x20] sm:$0xff]
        %v398 = vld [vmem:[%s4 + $0x28] sm:$0xff]
        %v399 = vld [vmem:[%s4 + $0x30] sm:$0xff]
        %v400 = vld [vmem:[%s4 + $0x38] sm:$0xff]
        %v401 = vld [vmem:[%s4 + $0x40] sm:$0xff]
        %v402 = vld [vmem:[%s4 + $0x48] sm:$0xff]
        %v403 = vld [vmem:[%s4 + $0x50] sm:$0xff]
        %v404 = vld [vmem:[%s4 + $0x58] sm:$0xff]
        %v405 = vld [vmem:[%s4 + $0x60] sm:$0xff]
        %v406 = vld [vmem:[%s4 + $0x68] sm:$0xff]
        %v407 = vld [vmem:[%s4 + $0x70] sm:$0xff]
        %v408 = vld [vmem:[%s4 + $0x78] sm:$0xff]
        %v409 = vld [vmem:[%s374] sm:$0xff]
        %v410 = vld [vmem:[%s374 + $0x8] sm:$0xff]
        %v411 = vld [vmem:[%s374 + $0x10] sm:$0xff]
        %v412 = vld [vmem:[%s374 + $0x18] sm:$0xff]
        %v413 = vld [vmem:[%s374 + $0x20] sm:$0xff]
        %v414 = vld [vmem:[%s374 + $0x28] sm:$0xff]
        %v415 = vld [vmem:[%s374 + $0x30] sm:$0xff]
        %v416 = vld [vmem:[%s374 + $0x38] sm:$0xff]
        %v417 = vld [vmem:[%s374 + $0x40] sm:$0xff]
        %v418 = vld [vmem:[%s374 + $0x48] sm:$0xff]
        %v419 = vld [vmem:[%s374 + $0x50] sm:$0xff]
        %v420 = vld [vmem:[%s374 + $0x58] sm:$0xff]
        %v421 = vld [vmem:[%s374 + $0x60] sm:$0xff]
        %v422 = vld [vmem:[%s374 + $0x68] sm:$0xff]
        %v423 = vld [vmem:[%s374 + $0x70] sm:$0xff]
        %v424 = vld [vmem:[%s374 + $0x78] sm:$0xff]
        %426 = vset.pattern.permute.xlu0 0
        %427 = vperm.xlu0 %426, %v393
        %v428 = vpop.permute.xlu0 %427
        %431 = vset.pattern.permute.xlu0 0
        %432 = vperm.xlu0 %431, %v394
        %v433 = vpop.permute.xlu0 %432
        %436 = vset.pattern.permute.xlu0 0
        %437 = vperm.xlu0 %436, %v395
        %v438 = vpop.permute.xlu0 %437
        %441 = vset.pattern.permute.xlu0 0
        %442 = vperm.xlu0 %441, %v396
        %v443 = vpop.permute.xlu0 %442
        %446 = vset.pattern.permute.xlu0 0
        %447 = vperm.xlu0 %446, %v397
        %v448 = vpop.permute.xlu0 %447
        %451 = vset.pattern.permute.xlu0 0
        %452 = vperm.xlu0 %451, %v398
        %v453 = vpop.permute.xlu0 %452
        %456 = vset.pattern.permute.xlu0 0
        %457 = vperm.xlu0 %456, %v399
        %v458 = vpop.permute.xlu0 %457
        %461 = vset.pattern.permute.xlu0 0
        %462 = vperm.xlu0 %461, %v400
        %v463 = vpop.permute.xlu0 %462
        %466 = vset.pattern.permute.xlu0 0
        %467 = vperm.xlu0 %466, %v401
        %v468 = vpop.permute.xlu0 %467
        %471 = vset.pattern.permute.xlu0 0
        %472 = vperm.xlu0 %471, %v402
        %v473 = vpop.permute.xlu0 %472
        %476 = vset.pattern.permute.xlu0 0
        %477 = vperm.xlu0 %476, %v403
        %v478 = vpop.permute.xlu0 %477
        %481 = vset.pattern.permute.xlu0 0
        %482 = vperm.xlu0 %481, %v404
        %v483 = vpop.permute.xlu0 %482
        %486 = vset.pattern.permute.xlu0 0
        %487 = vperm.xlu0 %486, %v405
        %v488 = vpop.permute.xlu0 %487
        %491 = vset.pattern.permute.xlu0 0
        %492 = vperm.xlu0 %491, %v406
        %v493 = vpop.permute.xlu0 %492
        %496 = vset.pattern.permute.xlu0 0
        %497 = vperm.xlu0 %496, %v407
        %v498 = vpop.permute.xlu0 %497
        %501 = vset.pattern.permute.xlu0 0
        %502 = vperm.xlu0 %501, %v408
        %v503 = vpop.permute.xlu0 %502
        %v506 = vperm.slane %v392, 0
        %v507 = vperm.slane %v392, 4
        %v510 = vperm.slane %v506, 0
        %v511 = vperm.slane %v507, 0
        %v512 = vmul.f32 %v428, %v510
        %v513 = vmul.f32 %v428, %v511
        %v514 = vmul.f32 %v433, %v510
        %v515 = vmul.f32 %v433, %v511
        %v516 = vmul.f32 %v438, %v510
        %v517 = vmul.f32 %v438, %v511
        %v518 = vmul.f32 %v443, %v510
        %v519 = vmul.f32 %v443, %v511
        %v520 = vmul.f32 %v448, %v510
        %v521 = vmul.f32 %v448, %v511
        %v522 = vmul.f32 %v453, %v510
        %v523 = vmul.f32 %v453, %v511
        %v524 = vmul.f32 %v458, %v510
        %v525 = vmul.f32 %v458, %v511
        %v526 = vmul.f32 %v463, %v510
        %v527 = vmul.f32 %v463, %v511
        %v528 = vmul.f32 %v468, %v510
        %v529 = vmul.f32 %v468, %v511
        %v530 = vmul.f32 %v473, %v510
        %v531 = vmul.f32 %v473, %v511
        %v532 = vmul.f32 %v478, %v510
        %v533 = vmul.f32 %v478, %v511
        %v534 = vmul.f32 %v483, %v510
        %v535 = vmul.f32 %v483, %v511
        %v536 = vmul.f32 %v488, %v510
        %v537 = vmul.f32 %v488, %v511
        %v538 = vmul.f32 %v493, %v510
        %v539 = vmul.f32 %v493, %v511
        %v540 = vmul.f32 %v498, %v510
        %v541 = vmul.f32 %v498, %v511
        %v542 = vmul.f32 %v503, %v510
        %v543 = vmul.f32 %v503, %v511
        %545 = vset.pattern.permute.xlu0 0
        %546 = vperm.xlu0 %545, %v409
        %v547 = vpop.permute.xlu0 %546
        %550 = vset.pattern.permute.xlu0 0
        %551 = vperm.xlu0 %550, %v410
        %v552 = vpop.permute.xlu0 %551
        %555 = vset.pattern.permute.xlu0 0
        %556 = vperm.xlu0 %555, %v411
        %v557 = vpop.permute.xlu0 %556
        %560 = vset.pattern.permute.xlu0 0
        %561 = vperm.xlu0 %560, %v412
        %v562 = vpop.permute.xlu0 %561
        %565 = vset.pattern.permute.xlu0 0
        %566 = vperm.xlu0 %565, %v413
        %v567 = vpop.permute.xlu0 %566
        %570 = vset.pattern.permute.xlu0 0
        %571 = vperm.xlu0 %570, %v414
        %v572 = vpop.permute.xlu0 %571
        %575 = vset.pattern.permute.xlu0 0
        %576 = vperm.xlu0 %575, %v415
        %v577 = vpop.permute.xlu0 %576
        %580 = vset.pattern.permute.xlu0 0
        %581 = vperm.xlu0 %580, %v416
        %v582 = vpop.permute.xlu0 %581
        %585 = vset.pattern.permute.xlu0 0
        %586 = vperm.xlu0 %585, %v417
        %v587 = vpop.permute.xlu0 %586
        %590 = vset.pattern.permute.xlu0 0
        %591 = vperm.xlu0 %590, %v418
        %v592 = vpop.permute.xlu0 %591
        %595 = vset.pattern.permute.xlu0 0
        %596 = vperm.xlu0 %595, %v419
        %v597 = vpop.permute.xlu0 %596
        %600 = vset.pattern.permute.xlu0 0
        %601 = vperm.xlu0 %600, %v420
        %v602 = vpop.permute.xlu0 %601
        %605 = vset.pattern.permute.xlu0 0
        %606 = vperm.xlu0 %605, %v421
        %v607 = vpop.permute.xlu0 %606
        %610 = vset.pattern.permute.xlu0 0
        %611 = vperm.xlu0 %610, %v422
        %v612 = vpop.permute.xlu0 %611
        %615 = vset.pattern.permute.xlu0 0
        %616 = vperm.xlu0 %615, %v423
        %v617 = vpop.permute.xlu0 %616
        %620 = vset.pattern.permute.xlu0 0
        %621 = vperm.xlu0 %620, %v424
        %v622 = vpop.permute.xlu0 %621
        %v624 = vadd.f32 %v547, %v512
        %v625 = vadd.f32 %v547, %v513
        %v626 = vadd.f32 %v552, %v514
        %v627 = vadd.f32 %v552, %v515
        %v628 = vadd.f32 %v557, %v516
        %v629 = vadd.f32 %v557, %v517
        %v630 = vadd.f32 %v562, %v518
        %v631 = vadd.f32 %v562, %v519
        %v632 = vadd.f32 %v567, %v520
        %v633 = vadd.f32 %v567, %v521
        %v634 = vadd.f32 %v572, %v522
        %v635 = vadd.f32 %v572, %v523
        %v636 = vadd.f32 %v577, %v524
        %v637 = vadd.f32 %v577, %v525
        %v638 = vadd.f32 %v582, %v526
        %v639 = vadd.f32 %v582, %v527
        %v640 = vadd.f32 %v587, %v528
        %v641 = vadd.f32 %v587, %v529
        %v642 = vadd.f32 %v592, %v530
        %v643 = vadd.f32 %v592, %v531
        %v644 = vadd.f32 %v597, %v532
        %v645 = vadd.f32 %v597, %v533
        %v646 = vadd.f32 %v602, %v534
        %v647 = vadd.f32 %v602, %v535
        %v648 = vadd.f32 %v607, %v536
        %v649 = vadd.f32 %v607, %v537
        %v650 = vadd.f32 %v612, %v538
        %v651 = vadd.f32 %v612, %v539
        %v652 = vadd.f32 %v617, %v540
        %v653 = vadd.f32 %v617, %v541
        %v654 = vadd.f32 %v622, %v542
        %v655 = vadd.f32 %v622, %v543
        %656 = vset.pattern.permute.xlu0 1
        %657 = vperm.xlu0 %656, %v393
        %v658 = vpop.permute.xlu0 %657
        %660 = vset.pattern.permute.xlu0 1
        %661 = vperm.xlu0 %660, %v394
        %v662 = vpop.permute.xlu0 %661
        %664 = vset.pattern.permute.xlu0 1
        %665 = vperm.xlu0 %664, %v395
        %v666 = vpop.permute.xlu0 %665
        %668 = vset.pattern.permute.xlu0 1
        %669 = vperm.xlu0 %668, %v396
        %v670 = vpop.permute.xlu0 %669
        %672 = vset.pattern.permute.xlu0 1
        %673 = vperm.xlu0 %672, %v397
        %v674 = vpop.permute.xlu0 %673
        %676 = vset.pattern.permute.xlu0 1
        %677 = vperm.xlu0 %676, %v398
        %v678 = vpop.permute.xlu0 %677
        %680 = vset.pattern.permute.xlu0 1
        %681 = vperm.xlu0 %680, %v399
        %v682 = vpop.permute.xlu0 %681
        %684 = vset.pattern.permute.xlu0 1
        %685 = vperm.xlu0 %684, %v400
        %v686 = vpop.permute.xlu0 %685
        %688 = vset.pattern.permute.xlu0 1
        %689 = vperm.xlu0 %688, %v401
        %v690 = vpop.permute.xlu0 %689
        %692 = vset.pattern.permute.xlu0 1
        %693 = vperm.xlu0 %692, %v402
        %v694 = vpop.permute.xlu0 %693
        %696 = vset.pattern.permute.xlu0 1
        %697 = vperm.xlu0 %696, %v403
        %v698 = vpop.permute.xlu0 %697
        %700 = vset.pattern.permute.xlu0 1
        %701 = vperm.xlu0 %700, %v404
        %v702 = vpop.permute.xlu0 %701
        %704 = vset.pattern.permute.xlu0 1
        %705 = vperm.xlu0 %704, %v405
        %v706 = vpop.permute.xlu0 %705
        %708 = vset.pattern.permute.xlu0 1
        %709 = vperm.xlu0 %708, %v406
        %v710 = vpop.permute.xlu0 %709
        %712 = vset.pattern.permute.xlu0 1
        %713 = vperm.xlu0 %712, %v407
        %v714 = vpop.permute.xlu0 %713
        %716 = vset.pattern.permute.xlu0 1
        %717 = vperm.xlu0 %716, %v408
        %v718 = vpop.permute.xlu0 %717
        %v720 = vperm.slane %v392, 1
        %v721 = vperm.slane %v392, 5
        %v724 = vperm.slane %v720, 1
        %v725 = vperm.slane %v721, 1
        %v726 = vmul.f32 %v658, %v724
        %v727 = vmul.f32 %v658, %v725
        %v728 = vmul.f32 %v662, %v724
        %v729 = vmul.f32 %v662, %v725
        %v730 = vmul.f32 %v666, %v724
        %v731 = vmul.f32 %v666, %v725
        %v732 = vmul.f32 %v670, %v724
        %v733 = vmul.f32 %v670, %v725
        %v734 = vmul.f32 %v674, %v724
        %v735 = vmul.f32 %v674, %v725
        %v736 = vmul.f32 %v678, %v724
        %v737 = vmul.f32 %v678, %v725
        %v738 = vmul.f32 %v682, %v724
        %v739 = vmul.f32 %v682, %v725
        %v740 = vmul.f32 %v686, %v724
        %v741 = vmul.f32 %v686, %v725
        %v742 = vmul.f32 %v690, %v724
        %v743 = vmul.f32 %v690, %v725
        %v744 = vmul.f32 %v694, %v724
        %v745 = vmul.f32 %v694, %v725
        %v746 = vmul.f32 %v698, %v724
        %v747 = vmul.f32 %v698, %v725
        %v748 = vmul.f32 %v702, %v724
        %v749 = vmul.f32 %v702, %v725
        %v750 = vmul.f32 %v706, %v724
        %v751 = vmul.f32 %v706, %v725
        %v752 = vmul.f32 %v710, %v724
        %v753 = vmul.f32 %v710, %v725
        %v754 = vmul.f32 %v714, %v724
        %v755 = vmul.f32 %v714, %v725
        %v756 = vmul.f32 %v718, %v724
        %v757 = vmul.f32 %v718, %v725
        %v758 = vadd.f32 %v624, %v726
        %v759 = vadd.f32 %v625, %v727
        %v760 = vadd.f32 %v626, %v728
        %v761 = vadd.f32 %v627, %v729
        %v762 = vadd.f32 %v628, %v730
        %v763 = vadd.f32 %v629, %v731
        %v764 = vadd.f32 %v630, %v732
        %v765 = vadd.f32 %v631, %v733
        %v766 = vadd.f32 %v632, %v734
        %v767 = vadd.f32 %v633, %v735
        %v768 = vadd.f32 %v634, %v736
        %v769 = vadd.f32 %v635, %v737
        %v770 = vadd.f32 %v636, %v738
        %v771 = vadd.f32 %v637, %v739
        %v772 = vadd.f32 %v638, %v740
        %v773 = vadd.f32 %v639, %v741
        %v774 = vadd.f32 %v640, %v742
        %v775 = vadd.f32 %v641, %v743
        %v776 = vadd.f32 %v642, %v744
        %v777 = vadd.f32 %v643, %v745
        %v778 = vadd.f32 %v644, %v746
        %v779 = vadd.f32 %v645, %v747
        %v780 = vadd.f32 %v646, %v748
        %v781 = vadd.f32 %v647, %v749
        %v782 = vadd.f32 %v648, %v750
        %v783 = vadd.f32 %v649, %v751
        %v784 = vadd.f32 %v650, %v752
        %v785 = vadd.f32 %v651, %v753
        %v786 = vadd.f32 %v652, %v754
        %v787 = vadd.f32 %v653, %v755
        %v788 = vadd.f32 %v654, %v756
        %v789 = vadd.f32 %v655, %v757
        %790 = vset.pattern.permute.xlu0 2
        %791 = vperm.xlu0 %790, %v393
        %v792 = vpop.permute.xlu0 %791
        %794 = vset.pattern.permute.xlu0 2
        %795 = vperm.xlu0 %794, %v394
        %v796 = vpop.permute.xlu0 %795
        %798 = vset.pattern.permute.xlu0 2
        %799 = vperm.xlu0 %798, %v395
        %v800 = vpop.permute.xlu0 %799
        %802 = vset.pattern.permute.xlu0 2
        %803 = vperm.xlu0 %802, %v396
        %v804 = vpop.permute.xlu0 %803
        %806 = vset.pattern.permute.xlu0 2
        %807 = vperm.xlu0 %806, %v397
        %v808 = vpop.permute.xlu0 %807
        %810 = vset.pattern.permute.xlu0 2
        %811 = vperm.xlu0 %810, %v398
        %v812 = vpop.permute.xlu0 %811
        %814 = vset.pattern.permute.xlu0 2
        %815 = vperm.xlu0 %814, %v399
        %v816 = vpop.permute.xlu0 %815
        %818 = vset.pattern.permute.xlu0 2
        %819 = vperm.xlu0 %818, %v400
        %v820 = vpop.permute.xlu0 %819
        %822 = vset.pattern.permute.xlu0 2
        %823 = vperm.xlu0 %822, %v401
        %v824 = vpop.permute.xlu0 %823
        %826 = vset.pattern.permute.xlu0 2
        %827 = vperm.xlu0 %826, %v402
        %v828 = vpop.permute.xlu0 %827
        %830 = vset.pattern.permute.xlu0 2
        %831 = vperm.xlu0 %830, %v403
        %v832 = vpop.permute.xlu0 %831
        %834 = vset.pattern.permute.xlu0 2
        %835 = vperm.xlu0 %834, %v404
        %v836 = vpop.permute.xlu0 %835
        %838 = vset.pattern.permute.xlu0 2
        %839 = vperm.xlu0 %838, %v405
        %v840 = vpop.permute.xlu0 %839
        %842 = vset.pattern.permute.xlu0 2
        %843 = vperm.xlu0 %842, %v406
        %v844 = vpop.permute.xlu0 %843
        %846 = vset.pattern.permute.xlu0 2
        %847 = vperm.xlu0 %846, %v407
        %v848 = vpop.permute.xlu0 %847
        %850 = vset.pattern.permute.xlu0 2
        %851 = vperm.xlu0 %850, %v408
        %v852 = vpop.permute.xlu0 %851
        %v854 = vperm.slane %v392, 2
        %v855 = vperm.slane %v392, 6
        %v858 = vperm.slane %v854, 2
        %v859 = vperm.slane %v855, 2
        %v860 = vmul.f32 %v792, %v858
        %v861 = vmul.f32 %v792, %v859
        %v862 = vmul.f32 %v796, %v858
        %v863 = vmul.f32 %v796, %v859
        %v864 = vmul.f32 %v800, %v858
        %v865 = vmul.f32 %v800, %v859
        %v866 = vmul.f32 %v804, %v858
        %v867 = vmul.f32 %v804, %v859
        %v868 = vmul.f32 %v808, %v858
        %v869 = vmul.f32 %v808, %v859
        %v870 = vmul.f32 %v812, %v858
        %v871 = vmul.f32 %v812, %v859
        %v872 = vmul.f32 %v816, %v858
        %v873 = vmul.f32 %v816, %v859
        %v874 = vmul.f32 %v820, %v858
        %v875 = vmul.f32 %v820, %v859
        %v876 = vmul.f32 %v824, %v858
        %v877 = vmul.f32 %v824, %v859
        %v878 = vmul.f32 %v828, %v858
        %v879 = vmul.f32 %v828, %v859
        %v880 = vmul.f32 %v832, %v858
        %v881 = vmul.f32 %v832, %v859
        %v882 = vmul.f32 %v836, %v858
        %v883 = vmul.f32 %v836, %v859
        %v884 = vmul.f32 %v840, %v858
        %v885 = vmul.f32 %v840, %v859
        %v886 = vmul.f32 %v844, %v858
        %v887 = vmul.f32 %v844, %v859
        %v888 = vmul.f32 %v848, %v858
        %v889 = vmul.f32 %v848, %v859
        %v890 = vmul.f32 %v852, %v858
        %v891 = vmul.f32 %v852, %v859
        %v892 = vadd.f32 %v758, %v860
        %v893 = vadd.f32 %v759, %v861
        %v894 = vadd.f32 %v760, %v862
        %v895 = vadd.f32 %v761, %v863
        %v896 = vadd.f32 %v762, %v864
        %v897 = vadd.f32 %v763, %v865
        %v898 = vadd.f32 %v764, %v866
        %v899 = vadd.f32 %v765, %v867
        %v900 = vadd.f32 %v766, %v868
        %v901 = vadd.f32 %v767, %v869
        %v902 = vadd.f32 %v768, %v870
        %v903 = vadd.f32 %v769, %v871
        %v904 = vadd.f32 %v770, %v872
        %v905 = vadd.f32 %v771, %v873
        %v906 = vadd.f32 %v772, %v874
        %v907 = vadd.f32 %v773, %v875
        %v908 = vadd.f32 %v774, %v876
        %v909 = vadd.f32 %v775, %v877
        %v910 = vadd.f32 %v776, %v878
        %v911 = vadd.f32 %v777, %v879
        %v912 = vadd.f32 %v778, %v880
        %v913 = vadd.f32 %v779, %v881
        %v914 = vadd.f32 %v780, %v882
        %v915 = vadd.f32 %v781, %v883
        %v916 = vadd.f32 %v782, %v884
        %v917 = vadd.f32 %v783, %v885
        %v918 = vadd.f32 %v784, %v886
        %v919 = vadd.f32 %v785, %v887
        %v920 = vadd.f32 %v786, %v888
        %v921 = vadd.f32 %v787, %v889
        %v922 = vadd.f32 %v788, %v890
        %v923 = vadd.f32 %v789, %v891
        %924 = vset.pattern.permute.xlu0 3
        %925 = vperm.xlu0 %924, %v393
        %v926 = vpop.permute.xlu0 %925
        %928 = vset.pattern.permute.xlu0 3
        %929 = vperm.xlu0 %928, %v394
        %v930 = vpop.permute.xlu0 %929
        %932 = vset.pattern.permute.xlu0 3
        %933 = vperm.xlu0 %932, %v395
        %v934 = vpop.permute.xlu0 %933
        %936 = vset.pattern.permute.xlu0 3
        %937 = vperm.xlu0 %936, %v396
        %v938 = vpop.permute.xlu0 %937
        %940 = vset.pattern.permute.xlu0 3
        %941 = vperm.xlu0 %940, %v397
        %v942 = vpop.permute.xlu0 %941
        %944 = vset.pattern.permute.xlu0 3
        %945 = vperm.xlu0 %944, %v398
        %v946 = vpop.permute.xlu0 %945
        %948 = vset.pattern.permute.xlu0 3
        %949 = vperm.xlu0 %948, %v399
        %v950 = vpop.permute.xlu0 %949
        %952 = vset.pattern.permute.xlu0 3
        %953 = vperm.xlu0 %952, %v400
        %v954 = vpop.permute.xlu0 %953
        %956 = vset.pattern.permute.xlu0 3
        %957 = vperm.xlu0 %956, %v401
        %v958 = vpop.permute.xlu0 %957
        %960 = vset.pattern.permute.xlu0 3
        %961 = vperm.xlu0 %960, %v402
        %v962 = vpop.permute.xlu0 %961
        %964 = vset.pattern.permute.xlu0 3
        %965 = vperm.xlu0 %964, %v403
        %v966 = vpop.permute.xlu0 %965
        %968 = vset.pattern.permute.xlu0 3
        %969 = vperm.xlu0 %968, %v404
        %v970 = vpop.permute.xlu0 %969
        %972 = vset.pattern.permute.xlu0 3
        %973 = vperm.xlu0 %972, %v405
        %v974 = vpop.permute.xlu0 %973
        %976 = vset.pattern.permute.xlu0 3
        %977 = vperm.xlu0 %976, %v406
        %v978 = vpop.permute.xlu0 %977
        %980 = vset.pattern.permute.xlu0 3
        %981 = vperm.xlu0 %980, %v407
        %v982 = vpop.permute.xlu0 %981
        %984 = vset.pattern.permute.xlu0 3
        %985 = vperm.xlu0 %984, %v408
        %v986 = vpop.permute.xlu0 %985
        %v988 = vperm.slane %v392, 3
        %v989 = vperm.slane %v392, 7
        %v992 = vperm.slane %v988, 3
        %v993 = vperm.slane %v989, 3
        %v994 = vmul.f32 %v926, %v992
        %v995 = vmul.f32 %v926, %v993
        %v996 = vmul.f32 %v930, %v992
        %v997 = vmul.f32 %v930, %v993
        %v998 = vmul.f32 %v934, %v992
        %v999 = vmul.f32 %v934, %v993
        %v1000 = vmul.f32 %v938, %v992
        %v1001 = vmul.f32 %v938, %v993
        %v1002 = vmul.f32 %v942, %v992
        %v1003 = vmul.f32 %v942, %v993
        %v1004 = vmul.f32 %v946, %v992
        %v1005 = vmul.f32 %v946, %v993
        %v1006 = vmul.f32 %v950, %v992
        %v1007 = vmul.f32 %v950, %v993
        %v1008 = vmul.f32 %v954, %v992
        %v1009 = vmul.f32 %v954, %v993
        %v1010 = vmul.f32 %v958, %v992
        %v1011 = vmul.f32 %v958, %v993
        %v1012 = vmul.f32 %v962, %v992
        %v1013 = vmul.f32 %v962, %v993
        %v1014 = vmul.f32 %v966, %v992
        %v1015 = vmul.f32 %v966, %v993
        %v1016 = vmul.f32 %v970, %v992
        %v1017 = vmul.f32 %v970, %v993
        %v1018 = vmul.f32 %v974, %v992
        %v1019 = vmul.f32 %v974, %v993
        %v1020 = vmul.f32 %v978, %v992
        %v1021 = vmul.f32 %v978, %v993
        %v1022 = vmul.f32 %v982, %v992
        %v1023 = vmul.f32 %v982, %v993
        %v1024 = vmul.f32 %v986, %v992
        %v1025 = vmul.f32 %v986, %v993
        %v1026 = vadd.f32 %v892, %v994
        %v1027 = vadd.f32 %v893, %v995
        %v1028 = vadd.f32 %v894, %v996
        %v1029 = vadd.f32 %v895, %v997
        %v1030 = vadd.f32 %v896, %v998
        %v1031 = vadd.f32 %v897, %v999
        %v1032 = vadd.f32 %v898, %v1000
        %v1033 = vadd.f32 %v899, %v1001
        %v1034 = vadd.f32 %v900, %v1002
        %v1035 = vadd.f32 %v901, %v1003
        %v1036 = vadd.f32 %v902, %v1004
        %v1037 = vadd.f32 %v903, %v1005
        %v1038 = vadd.f32 %v904, %v1006
        %v1039 = vadd.f32 %v905, %v1007
        %v1040 = vadd.f32 %v906, %v1008
        %v1041 = vadd.f32 %v907, %v1009
        %v1042 = vadd.f32 %v908, %v1010
        %v1043 = vadd.f32 %v909, %v1011
        %v1044 = vadd.f32 %v910, %v1012
        %v1045 = vadd.f32 %v911, %v1013
        %v1046 = vadd.f32 %v912, %v1014
        %v1047 = vadd.f32 %v913, %v1015
        %v1048 = vadd.f32 %v914, %v1016
        %v1049 = vadd.f32 %v915, %v1017
        %v1050 = vadd.f32 %v916, %v1018
        %v1051 = vadd.f32 %v917, %v1019
        %v1052 = vadd.f32 %v918, %v1020
        %v1053 = vadd.f32 %v919, %v1021
        %v1054 = vadd.f32 %v920, %v1022
        %v1055 = vadd.f32 %v921, %v1023
        %v1056 = vadd.f32 %v922, %v1024
        %v1057 = vadd.f32 %v923, %v1025
        %v1058 = vxor.u32 %v1026, 2147483648
        %v1059 = vxor.u32 %v1027, 2147483648
        %v1060 = vxor.u32 %v1028, 2147483648
        %v1061 = vxor.u32 %v1029, 2147483648
        %v1062 = vxor.u32 %v1030, 2147483648
        %v1063 = vxor.u32 %v1031, 2147483648
        %v1064 = vxor.u32 %v1032, 2147483648
        %v1065 = vxor.u32 %v1033, 2147483648
        %v1066 = vxor.u32 %v1034, 2147483648
        %v1067 = vxor.u32 %v1035, 2147483648
        %v1068 = vxor.u32 %v1036, 2147483648
        %v1069 = vxor.u32 %v1037, 2147483648
        %v1070 = vxor.u32 %v1038, 2147483648
        %v1071 = vxor.u32 %v1039, 2147483648
        %v1072 = vxor.u32 %v1040, 2147483648
        %v1073 = vxor.u32 %v1041, 2147483648
        %v1074 = vxor.u32 %v1042, 2147483648
        %v1075 = vxor.u32 %v1043, 2147483648
        %v1076 = vxor.u32 %v1044, 2147483648
        %v1077 = vxor.u32 %v1045, 2147483648
        %v1078 = vxor.u32 %v1046, 2147483648
        %v1079 = vxor.u32 %v1047, 2147483648
        %v1080 = vxor.u32 %v1048, 2147483648
        %v1081 = vxor.u32 %v1049, 2147483648
        %v1082 = vxor.u32 %v1050, 2147483648
        %v1083 = vxor.u32 %v1051, 2147483648
        %v1084 = vxor.u32 %v1052, 2147483648
        %v1085 = vxor.u32 %v1053, 2147483648
        %v1086 = vxor.u32 %v1054, 2147483648
        %v1087 = vxor.u32 %v1055, 2147483648
        %v1088 = vxor.u32 %v1056, 2147483648
        %v1089 = vxor.u32 %v1057, 2147483648
        %v1090 = vmul.f32 %v1058, 1.442695
        %v1091 = vpow.pop %v1090
        %v1092 = vmul.f32 %v1059, 1.442695
        %v1093 = vpow.pop %v1092
        %v1094 = vmul.f32 %v1060, 1.442695
        %v1095 = vpow.pop %v1094
        %v1096 = vmul.f32 %v1061, 1.442695
        %v1097 = vpow.pop %v1096
        %v1098 = vmul.f32 %v1062, 1.442695
        %v1099 = vpow.pop %v1098
        %v1100 = vmul.f32 %v1063, 1.442695
        %v1101 = vpow.pop %v1100
        %v1102 = vmul.f32 %v1064, 1.442695
        %v1103 = vpow.pop %v1102
        %v1104 = vmul.f32 %v1065, 1.442695
        %v1105 = vpow.pop %v1104
        %v1106 = vmul.f32 %v1066, 1.442695
        %v1107 = vpow.pop %v1106
        %v1108 = vmul.f32 %v1067, 1.442695
        %v1109 = vpow.pop %v1108
        %v1110 = vmul.f32 %v1068, 1.442695
        %v1111 = vpow.pop %v1110
        %v1112 = vmul.f32 %v1069, 1.442695
        %v1113 = vpow.pop %v1112
        %v1114 = vmul.f32 %v1070, 1.442695
        %v1115 = vpow.pop %v1114
        %v1116 = vmul.f32 %v1071, 1.442695
        %v1117 = vpow.pop %v1116
        %v1118 = vmul.f32 %v1072, 1.442695
        %v1119 = vpow.pop %v1118
        %v1120 = vmul.f32 %v1073, 1.442695
        %v1121 = vpow.pop %v1120
        %v1122 = vmul.f32 %v1074, 1.442695
        %v1123 = vpow.pop %v1122
        %v1124 = vmul.f32 %v1075, 1.442695
        %v1125 = vpow.pop %v1124
        %v1126 = vmul.f32 %v1076, 1.442695
        %v1127 = vpow.pop %v1126
        %v1128 = vmul.f32 %v1077, 1.442695
        %v1129 = vpow.pop %v1128
        %v1130 = vmul.f32 %v1078, 1.442695
        %v1131 = vpow.pop %v1130
        %v1132 = vmul.f32 %v1079, 1.442695
        %v1133 = vpow.pop %v1132
        %v1134 = vmul.f32 %v1080, 1.442695
        %v1135 = vpow.pop %v1134
        %v1136 = vmul.f32 %v1081, 1.442695
        %v1137 = vpow.pop %v1136
        %v1138 = vmul.f32 %v1082, 1.442695
        %v1139 = vpow.pop %v1138
        %v1140 = vmul.f32 %v1083, 1.442695
        %v1141 = vpow.pop %v1140
        %v1142 = vmul.f32 %v1084, 1.442695
        %v1143 = vpow.pop %v1142
        %v1144 = vmul.f32 %v1085, 1.442695
        %v1145 = vpow.pop %v1144
        %v1146 = vmul.f32 %v1086, 1.442695
        %v1147 = vpow.pop %v1146
        %v1148 = vmul.f32 %v1087, 1.442695
        %v1149 = vpow.pop %v1148
        %v1150 = vmul.f32 %v1088, 1.442695
        %v1151 = vpow.pop %v1150
        %v1152 = vmul.f32 %v1089, 1.442695
        %v1153 = vpow.pop %v1152
        %v1154 = vadd.f32 %v1091, 1.0
        %v1155 = vadd.f32 %v1093, 1.0
        %v1156 = vadd.f32 %v1095, 1.0
        %v1157 = vadd.f32 %v1097, 1.0
        %v1158 = vadd.f32 %v1099, 1.0
        %v1159 = vadd.f32 %v1101, 1.0
        %v1160 = vadd.f32 %v1103, 1.0
        %v1161 = vadd.f32 %v1105, 1.0
        %v1162 = vadd.f32 %v1107, 1.0
        %v1163 = vadd.f32 %v1109, 1.0
        %v1164 = vadd.f32 %v1111, 1.0
        %v1165 = vadd.f32 %v1113, 1.0
        %v1166 = vadd.f32 %v1115, 1.0
        %v1167 = vadd.f32 %v1117, 1.0
        %v1168 = vadd.f32 %v1119, 1.0
        %v1169 = vadd.f32 %v1121, 1.0
        %v1170 = vadd.f32 %v1123, 1.0
        %v1171 = vadd.f32 %v1125, 1.0
        %v1172 = vadd.f32 %v1127, 1.0
        %v1173 = vadd.f32 %v1129, 1.0
        %v1174 = vadd.f32 %v1131, 1.0
        %v1175 = vadd.f32 %v1133, 1.0
        %v1176 = vadd.f32 %v1135, 1.0
        %v1177 = vadd.f32 %v1137, 1.0
        %v1178 = vadd.f32 %v1139, 1.0
        %v1179 = vadd.f32 %v1141, 1.0
        %v1180 = vadd.f32 %v1143, 1.0
        %v1181 = vadd.f32 %v1145, 1.0
        %v1182 = vadd.f32 %v1147, 1.0
        %v1183 = vadd.f32 %v1149, 1.0
        %v1184 = vadd.f32 %v1151, 1.0
        %v1185 = vadd.f32 %v1153, 1.0
        %v1186 = vrcp.pop %v1154
        %v1187 = vmul.f32 %v1154, %v1186
        %v1188 = vsub.f32 1.0, %v1187
        %v1189 = vmul.f32 %v1186, %v1188
        %v1190 = vadd.f32 %v1186, %v1189
        %vm1191 = vweird.f32 %v1154
        %vm1192 = vweird.f32 %v1186
        %vm1193 = vmor %vm1191, %vm1192
        %v1194 = vsel %vm1193, %v1186, %v1190
        %v1195 = vand.u32 2147483647, %v1154
        %vm1196 = vcmp.eq.f32.partialorder %v1195, 8.507059e+37
        %v1197 = vand.u32 %v1154, 2147483648
        %v1198 = vor.u32 1.1754944e-38, %v1197
        %v1199 = vsel %vm1196, %v1198, %v1194
        %v1200 = vmul.f32 1.0, %v1199
        %v1201 = vrcp.pop %v1155
        %v1202 = vmul.f32 %v1155, %v1201
        %v1203 = vsub.f32 1.0, %v1202
        %v1204 = vmul.f32 %v1201, %v1203
        %v1205 = vadd.f32 %v1201, %v1204
        %vm1206 = vweird.f32 %v1155
        %vm1207 = vweird.f32 %v1201
        %vm1208 = vmor %vm1206, %vm1207
        %v1209 = vsel %vm1208, %v1201, %v1205
        %v1210 = vand.u32 2147483647, %v1155
        %vm1211 = vcmp.eq.f32.partialorder %v1210, 8.507059e+37
        %v1212 = vand.u32 %v1155, 2147483648
        %v1213 = vor.u32 1.1754944e-38, %v1212
        %v1214 = vsel %vm1211, %v1213, %v1209
        %v1215 = vmul.f32 1.0, %v1214
        %v1216 = vrcp.pop %v1156
        %v1217 = vmul.f32 %v1156, %v1216
        %v1218 = vsub.f32 1.0, %v1217
        %v1219 = vmul.f32 %v1216, %v1218
        %v1220 = vadd.f32 %v1216, %v1219
        %vm1221 = vweird.f32 %v1156
        %vm1222 = vweird.f32 %v1216
        %vm1223 = vmor %vm1221, %vm1222
        %v1224 = vsel %vm1223, %v1216, %v1220
        %v1225 = vand.u32 2147483647, %v1156
        %vm1226 = vcmp.eq.f32.partialorder %v1225, 8.507059e+37
        %v1227 = vand.u32 %v1156, 2147483648
        %v1228 = vor.u32 1.1754944e-38, %v1227
        %v1229 = vsel %vm1226, %v1228, %v1224
        %v1230 = vmul.f32 1.0, %v1229
        %v1231 = vrcp.pop %v1157
        %v1232 = vmul.f32 %v1157, %v1231
        %v1233 = vsub.f32 1.0, %v1232
        %v1234 = vmul.f32 %v1231, %v1233
        %v1235 = vadd.f32 %v1231, %v1234
        %vm1236 = vweird.f32 %v1157
        %vm1237 = vweird.f32 %v1231
        %vm1238 = vmor %vm1236, %vm1237
        %v1239 = vsel %vm1238, %v1231, %v1235
        %v1240 = vand.u32 2147483647, %v1157
        %vm1241 = vcmp.eq.f32.partialorder %v1240, 8.507059e+37
        %v1242 = vand.u32 %v1157, 2147483648
        %v1243 = vor.u32 1.1754944e-38, %v1242
        %v1244 = vsel %vm1241, %v1243, %v1239
        %v1245 = vmul.f32 1.0, %v1244
        %v1246 = vrcp.pop %v1158
        %v1247 = vmul.f32 %v1158, %v1246
        %v1248 = vsub.f32 1.0, %v1247
        %v1249 = vmul.f32 %v1246, %v1248
        %v1250 = vadd.f32 %v1246, %v1249
        %vm1251 = vweird.f32 %v1158
        %vm1252 = vweird.f32 %v1246
        %vm1253 = vmor %vm1251, %vm1252
        %v1254 = vsel %vm1253, %v1246, %v1250
        %v1255 = vand.u32 2147483647, %v1158
        %vm1256 = vcmp.eq.f32.partialorder %v1255, 8.507059e+37
        %v1257 = vand.u32 %v1158, 2147483648
        %v1258 = vor.u32 1.1754944e-38, %v1257
        %v1259 = vsel %vm1256, %v1258, %v1254
        %v1260 = vmul.f32 1.0, %v1259
        %v1261 = vrcp.pop %v1159
        %v1262 = vmul.f32 %v1159, %v1261
        %v1263 = vsub.f32 1.0, %v1262
        %v1264 = vmul.f32 %v1261, %v1263
        %v1265 = vadd.f32 %v1261, %v1264
        %vm1266 = vweird.f32 %v1159
        %vm1267 = vweird.f32 %v1261
        %vm1268 = vmor %vm1266, %vm1267
        %v1269 = vsel %vm1268, %v1261, %v1265
        %v1270 = vand.u32 2147483647, %v1159
        %vm1271 = vcmp.eq.f32.partialorder %v1270, 8.507059e+37
        %v1272 = vand.u32 %v1159, 2147483648
        %v1273 = vor.u32 1.1754944e-38, %v1272
        %v1274 = vsel %vm1271, %v1273, %v1269
        %v1275 = vmul.f32 1.0, %v1274
        %v1276 = vrcp.pop %v1160
        %v1277 = vmul.f32 %v1160, %v1276
        %v1278 = vsub.f32 1.0, %v1277
        %v1279 = vmul.f32 %v1276, %v1278
        %v1280 = vadd.f32 %v1276, %v1279
        %vm1281 = vweird.f32 %v1160
        %vm1282 = vweird.f32 %v1276
        %vm1283 = vmor %vm1281, %vm1282
        %v1284 = vsel %vm1283, %v1276, %v1280
        %v1285 = vand.u32 2147483647, %v1160
        %vm1286 = vcmp.eq.f32.partialorder %v1285, 8.507059e+37
        %v1287 = vand.u32 %v1160, 2147483648
        %v1288 = vor.u32 1.1754944e-38, %v1287
        %v1289 = vsel %vm1286, %v1288, %v1284
        %v1290 = vmul.f32 1.0, %v1289
        %v1291 = vrcp.pop %v1161
        %v1292 = vmul.f32 %v1161, %v1291
        %v1293 = vsub.f32 1.0, %v1292
        %v1294 = vmul.f32 %v1291, %v1293
        %v1295 = vadd.f32 %v1291, %v1294
        %vm1296 = vweird.f32 %v1161
        %vm1297 = vweird.f32 %v1291
        %vm1298 = vmor %vm1296, %vm1297
        %v1299 = vsel %vm1298, %v1291, %v1295
        %v1300 = vand.u32 2147483647, %v1161
        %vm1301 = vcmp.eq.f32.partialorder %v1300, 8.507059e+37
        %v1302 = vand.u32 %v1161, 2147483648
        %v1303 = vor.u32 1.1754944e-38, %v1302
        %v1304 = vsel %vm1301, %v1303, %v1299
        %v1305 = vmul.f32 1.0, %v1304
        %v1306 = vrcp.pop %v1162
        %v1307 = vmul.f32 %v1162, %v1306
        %v1308 = vsub.f32 1.0, %v1307
        %v1309 = vmul.f32 %v1306, %v1308
        %v1310 = vadd.f32 %v1306, %v1309
        %vm1311 = vweird.f32 %v1162
        %vm1312 = vweird.f32 %v1306
        %vm1313 = vmor %vm1311, %vm1312
        %v1314 = vsel %vm1313, %v1306, %v1310
        %v1315 = vand.u32 2147483647, %v1162
        %vm1316 = vcmp.eq.f32.partialorder %v1315, 8.507059e+37
        %v1317 = vand.u32 %v1162, 2147483648
        %v1318 = vor.u32 1.1754944e-38, %v1317
        %v1319 = vsel %vm1316, %v1318, %v1314
        %v1320 = vmul.f32 1.0, %v1319
        %v1321 = vrcp.pop %v1163
        %v1322 = vmul.f32 %v1163, %v1321
        %v1323 = vsub.f32 1.0, %v1322
        %v1324 = vmul.f32 %v1321, %v1323
        %v1325 = vadd.f32 %v1321, %v1324
        %vm1326 = vweird.f32 %v1163
        %vm1327 = vweird.f32 %v1321
        %vm1328 = vmor %vm1326, %vm1327
        %v1329 = vsel %vm1328, %v1321, %v1325
        %v1330 = vand.u32 2147483647, %v1163
        %vm1331 = vcmp.eq.f32.partialorder %v1330, 8.507059e+37
        %v1332 = vand.u32 %v1163, 2147483648
        %v1333 = vor.u32 1.1754944e-38, %v1332
        %v1334 = vsel %vm1331, %v1333, %v1329
        %v1335 = vmul.f32 1.0, %v1334
        %v1336 = vrcp.pop %v1164
        %v1337 = vmul.f32 %v1164, %v1336
        %v1338 = vsub.f32 1.0, %v1337
        %v1339 = vmul.f32 %v1336, %v1338
        %v1340 = vadd.f32 %v1336, %v1339
        %vm1341 = vweird.f32 %v1164
        %vm1342 = vweird.f32 %v1336
        %vm1343 = vmor %vm1341, %vm1342
        %v1344 = vsel %vm1343, %v1336, %v1340
        %v1345 = vand.u32 2147483647, %v1164
        %vm1346 = vcmp.eq.f32.partialorder %v1345, 8.507059e+37
        %v1347 = vand.u32 %v1164, 2147483648
        %v1348 = vor.u32 1.1754944e-38, %v1347
        %v1349 = vsel %vm1346, %v1348, %v1344
        %v1350 = vmul.f32 1.0, %v1349
        %v1351 = vrcp.pop %v1165
        %v1352 = vmul.f32 %v1165, %v1351
        %v1353 = vsub.f32 1.0, %v1352
        %v1354 = vmul.f32 %v1351, %v1353
        %v1355 = vadd.f32 %v1351, %v1354
        %vm1356 = vweird.f32 %v1165
        %vm1357 = vweird.f32 %v1351
        %vm1358 = vmor %vm1356, %vm1357
        %v1359 = vsel %vm1358, %v1351, %v1355
        %v1360 = vand.u32 2147483647, %v1165
        %vm1361 = vcmp.eq.f32.partialorder %v1360, 8.507059e+37
        %v1362 = vand.u32 %v1165, 2147483648
        %v1363 = vor.u32 1.1754944e-38, %v1362
        %v1364 = vsel %vm1361, %v1363, %v1359
        %v1365 = vmul.f32 1.0, %v1364
        %v1366 = vrcp.pop %v1166
        %v1367 = vmul.f32 %v1166, %v1366
        %v1368 = vsub.f32 1.0, %v1367
        %v1369 = vmul.f32 %v1366, %v1368
        %v1370 = vadd.f32 %v1366, %v1369
        %vm1371 = vweird.f32 %v1166
        %vm1372 = vweird.f32 %v1366
        %vm1373 = vmor %vm1371, %vm1372
        %v1374 = vsel %vm1373, %v1366, %v1370
        %v1375 = vand.u32 2147483647, %v1166
        %vm1376 = vcmp.eq.f32.partialorder %v1375, 8.507059e+37
        %v1377 = vand.u32 %v1166, 2147483648
        %v1378 = vor.u32 1.1754944e-38, %v1377
        %v1379 = vsel %vm1376, %v1378, %v1374
        %v1380 = vmul.f32 1.0, %v1379
        %v1381 = vrcp.pop %v1167
        %v1382 = vmul.f32 %v1167, %v1381
        %v1383 = vsub.f32 1.0, %v1382
        %v1384 = vmul.f32 %v1381, %v1383
        %v1385 = vadd.f32 %v1381, %v1384
        %vm1386 = vweird.f32 %v1167
        %vm1387 = vweird.f32 %v1381
        %vm1388 = vmor %vm1386, %vm1387
        %v1389 = vsel %vm1388, %v1381, %v1385
        %v1390 = vand.u32 2147483647, %v1167
        %vm1391 = vcmp.eq.f32.partialorder %v1390, 8.507059e+37
        %v1392 = vand.u32 %v1167, 2147483648
        %v1393 = vor.u32 1.1754944e-38, %v1392
        %v1394 = vsel %vm1391, %v1393, %v1389
        %v1395 = vmul.f32 1.0, %v1394
        %v1396 = vrcp.pop %v1168
        %v1397 = vmul.f32 %v1168, %v1396
        %v1398 = vsub.f32 1.0, %v1397
        %v1399 = vmul.f32 %v1396, %v1398
        %v1400 = vadd.f32 %v1396, %v1399
        %vm1401 = vweird.f32 %v1168
        %vm1402 = vweird.f32 %v1396
        %vm1403 = vmor %vm1401, %vm1402
        %v1404 = vsel %vm1403, %v1396, %v1400
        %v1405 = vand.u32 2147483647, %v1168
        %vm1406 = vcmp.eq.f32.partialorder %v1405, 8.507059e+37
        %v1407 = vand.u32 %v1168, 2147483648
        %v1408 = vor.u32 1.1754944e-38, %v1407
        %v1409 = vsel %vm1406, %v1408, %v1404
        %v1410 = vmul.f32 1.0, %v1409
        %v1411 = vrcp.pop %v1169
        %v1412 = vmul.f32 %v1169, %v1411
        %v1413 = vsub.f32 1.0, %v1412
        %v1414 = vmul.f32 %v1411, %v1413
        %v1415 = vadd.f32 %v1411, %v1414
        %vm1416 = vweird.f32 %v1169
        %vm1417 = vweird.f32 %v1411
        %vm1418 = vmor %vm1416, %vm1417
        %v1419 = vsel %vm1418, %v1411, %v1415
        %v1420 = vand.u32 2147483647, %v1169
        %vm1421 = vcmp.eq.f32.partialorder %v1420, 8.507059e+37
        %v1422 = vand.u32 %v1169, 2147483648
        %v1423 = vor.u32 1.1754944e-38, %v1422
        %v1424 = vsel %vm1421, %v1423, %v1419
        %v1425 = vmul.f32 1.0, %v1424
        %v1426 = vrcp.pop %v1170
        %v1427 = vmul.f32 %v1170, %v1426
        %v1428 = vsub.f32 1.0, %v1427
        %v1429 = vmul.f32 %v1426, %v1428
        %v1430 = vadd.f32 %v1426, %v1429
        %vm1431 = vweird.f32 %v1170
        %vm1432 = vweird.f32 %v1426
        %vm1433 = vmor %vm1431, %vm1432
        %v1434 = vsel %vm1433, %v1426, %v1430
        %v1435 = vand.u32 2147483647, %v1170
        %vm1436 = vcmp.eq.f32.partialorder %v1435, 8.507059e+37
        %v1437 = vand.u32 %v1170, 2147483648
        %v1438 = vor.u32 1.1754944e-38, %v1437
        %v1439 = vsel %vm1436, %v1438, %v1434
        %v1440 = vmul.f32 1.0, %v1439
        %v1441 = vrcp.pop %v1171
        %v1442 = vmul.f32 %v1171, %v1441
        %v1443 = vsub.f32 1.0, %v1442
        %v1444 = vmul.f32 %v1441, %v1443
        %v1445 = vadd.f32 %v1441, %v1444
        %vm1446 = vweird.f32 %v1171
        %vm1447 = vweird.f32 %v1441
        %vm1448 = vmor %vm1446, %vm1447
        %v1449 = vsel %vm1448, %v1441, %v1445
        %v1450 = vand.u32 2147483647, %v1171
        %vm1451 = vcmp.eq.f32.partialorder %v1450, 8.507059e+37
        %v1452 = vand.u32 %v1171, 2147483648
        %v1453 = vor.u32 1.1754944e-38, %v1452
        %v1454 = vsel %vm1451, %v1453, %v1449
        %v1455 = vmul.f32 1.0, %v1454
        %v1456 = vrcp.pop %v1172
        %v1457 = vmul.f32 %v1172, %v1456
        %v1458 = vsub.f32 1.0, %v1457
        %v1459 = vmul.f32 %v1456, %v1458
        %v1460 = vadd.f32 %v1456, %v1459
        %vm1461 = vweird.f32 %v1172
        %vm1462 = vweird.f32 %v1456
        %vm1463 = vmor %vm1461, %vm1462
        %v1464 = vsel %vm1463, %v1456, %v1460
        %v1465 = vand.u32 2147483647, %v1172
        %vm1466 = vcmp.eq.f32.partialorder %v1465, 8.507059e+37
        %v1467 = vand.u32 %v1172, 2147483648
        %v1468 = vor.u32 1.1754944e-38, %v1467
        %v1469 = vsel %vm1466, %v1468, %v1464
        %v1470 = vmul.f32 1.0, %v1469
        %v1471 = vrcp.pop %v1173
        %v1472 = vmul.f32 %v1173, %v1471
        %v1473 = vsub.f32 1.0, %v1472
        %v1474 = vmul.f32 %v1471, %v1473
        %v1475 = vadd.f32 %v1471, %v1474
        %vm1476 = vweird.f32 %v1173
        %vm1477 = vweird.f32 %v1471
        %vm1478 = vmor %vm1476, %vm1477
        %v1479 = vsel %vm1478, %v1471, %v1475
        %v1480 = vand.u32 2147483647, %v1173
        %vm1481 = vcmp.eq.f32.partialorder %v1480, 8.507059e+37
        %v1482 = vand.u32 %v1173, 2147483648
        %v1483 = vor.u32 1.1754944e-38, %v1482
        %v1484 = vsel %vm1481, %v1483, %v1479
        %v1485 = vmul.f32 1.0, %v1484
        %v1486 = vrcp.pop %v1174
        %v1487 = vmul.f32 %v1174, %v1486
        %v1488 = vsub.f32 1.0, %v1487
        %v1489 = vmul.f32 %v1486, %v1488
        %v1490 = vadd.f32 %v1486, %v1489
        %vm1491 = vweird.f32 %v1174
        %vm1492 = vweird.f32 %v1486
        %vm1493 = vmor %vm1491, %vm1492
        %v1494 = vsel %vm1493, %v1486, %v1490
        %v1495 = vand.u32 2147483647, %v1174
        %vm1496 = vcmp.eq.f32.partialorder %v1495, 8.507059e+37
        %v1497 = vand.u32 %v1174, 2147483648
        %v1498 = vor.u32 1.1754944e-38, %v1497
        %v1499 = vsel %vm1496, %v1498, %v1494
        %v1500 = vmul.f32 1.0, %v1499
        %v1501 = vrcp.pop %v1175
        %v1502 = vmul.f32 %v1175, %v1501
        %v1503 = vsub.f32 1.0, %v1502
        %v1504 = vmul.f32 %v1501, %v1503
        %v1505 = vadd.f32 %v1501, %v1504
        %vm1506 = vweird.f32 %v1175
        %vm1507 = vweird.f32 %v1501
        %vm1508 = vmor %vm1506, %vm1507
        %v1509 = vsel %vm1508, %v1501, %v1505
        %v1510 = vand.u32 2147483647, %v1175
        %vm1511 = vcmp.eq.f32.partialorder %v1510, 8.507059e+37
        %v1512 = vand.u32 %v1175, 2147483648
        %v1513 = vor.u32 1.1754944e-38, %v1512
        %v1514 = vsel %vm1511, %v1513, %v1509
        %v1515 = vmul.f32 1.0, %v1514
        %v1516 = vrcp.pop %v1176
        %v1517 = vmul.f32 %v1176, %v1516
        %v1518 = vsub.f32 1.0, %v1517
        %v1519 = vmul.f32 %v1516, %v1518
        %v1520 = vadd.f32 %v1516, %v1519
        %vm1521 = vweird.f32 %v1176
        %vm1522 = vweird.f32 %v1516
        %vm1523 = vmor %vm1521, %vm1522
        %v1524 = vsel %vm1523, %v1516, %v1520
        %v1525 = vand.u32 2147483647, %v1176
        %vm1526 = vcmp.eq.f32.partialorder %v1525, 8.507059e+37
        %v1527 = vand.u32 %v1176, 2147483648
        %v1528 = vor.u32 1.1754944e-38, %v1527
        %v1529 = vsel %vm1526, %v1528, %v1524
        %v1530 = vmul.f32 1.0, %v1529
        %v1531 = vrcp.pop %v1177
        %v1532 = vmul.f32 %v1177, %v1531
        %v1533 = vsub.f32 1.0, %v1532
        %v1534 = vmul.f32 %v1531, %v1533
        %v1535 = vadd.f32 %v1531, %v1534
        %vm1536 = vweird.f32 %v1177
        %vm1537 = vweird.f32 %v1531
        %vm1538 = vmor %vm1536, %vm1537
        %v1539 = vsel %vm1538, %v1531, %v1535
        %v1540 = vand.u32 2147483647, %v1177
        %vm1541 = vcmp.eq.f32.partialorder %v1540, 8.507059e+37
        %v1542 = vand.u32 %v1177, 2147483648
        %v1543 = vor.u32 1.1754944e-38, %v1542
        %v1544 = vsel %vm1541, %v1543, %v1539
        %v1545 = vmul.f32 1.0, %v1544
        %v1546 = vrcp.pop %v1178
        %v1547 = vmul.f32 %v1178, %v1546
        %v1548 = vsub.f32 1.0, %v1547
        %v1549 = vmul.f32 %v1546, %v1548
        %v1550 = vadd.f32 %v1546, %v1549
        %vm1551 = vweird.f32 %v1178
        %vm1552 = vweird.f32 %v1546
        %vm1553 = vmor %vm1551, %vm1552
        %v1554 = vsel %vm1553, %v1546, %v1550
        %v1555 = vand.u32 2147483647, %v1178
        %vm1556 = vcmp.eq.f32.partialorder %v1555, 8.507059e+37
        %v1557 = vand.u32 %v1178, 2147483648
        %v1558 = vor.u32 1.1754944e-38, %v1557
        %v1559 = vsel %vm1556, %v1558, %v1554
        %v1560 = vmul.f32 1.0, %v1559
        %v1561 = vrcp.pop %v1179
        %v1562 = vmul.f32 %v1179, %v1561
        %v1563 = vsub.f32 1.0, %v1562
        %v1564 = vmul.f32 %v1561, %v1563
        %v1565 = vadd.f32 %v1561, %v1564
        %vm1566 = vweird.f32 %v1179
        %vm1567 = vweird.f32 %v1561
        %vm1568 = vmor %vm1566, %vm1567
        %v1569 = vsel %vm1568, %v1561, %v1565
        %v1570 = vand.u32 2147483647, %v1179
        %vm1571 = vcmp.eq.f32.partialorder %v1570, 8.507059e+37
        %v1572 = vand.u32 %v1179, 2147483648
        %v1573 = vor.u32 1.1754944e-38, %v1572
        %v1574 = vsel %vm1571, %v1573, %v1569
        %v1575 = vmul.f32 1.0, %v1574
        %v1576 = vrcp.pop %v1180
        %v1577 = vmul.f32 %v1180, %v1576
        %v1578 = vsub.f32 1.0, %v1577
        %v1579 = vmul.f32 %v1576, %v1578
        %v1580 = vadd.f32 %v1576, %v1579
        %vm1581 = vweird.f32 %v1180
        %vm1582 = vweird.f32 %v1576
        %vm1583 = vmor %vm1581, %vm1582
        %v1584 = vsel %vm1583, %v1576, %v1580
        %v1585 = vand.u32 2147483647, %v1180
        %vm1586 = vcmp.eq.f32.partialorder %v1585, 8.507059e+37
        %v1587 = vand.u32 %v1180, 2147483648
        %v1588 = vor.u32 1.1754944e-38, %v1587
        %v1589 = vsel %vm1586, %v1588, %v1584
        %v1590 = vmul.f32 1.0, %v1589
        %v1591 = vrcp.pop %v1181
        %v1592 = vmul.f32 %v1181, %v1591
        %v1593 = vsub.f32 1.0, %v1592
        %v1594 = vmul.f32 %v1591, %v1593
        %v1595 = vadd.f32 %v1591, %v1594
        %vm1596 = vweird.f32 %v1181
        %vm1597 = vweird.f32 %v1591
        %vm1598 = vmor %vm1596, %vm1597
        %v1599 = vsel %vm1598, %v1591, %v1595
        %v1600 = vand.u32 2147483647, %v1181
        %vm1601 = vcmp.eq.f32.partialorder %v1600, 8.507059e+37
        %v1602 = vand.u32 %v1181, 2147483648
        %v1603 = vor.u32 1.1754944e-38, %v1602
        %v1604 = vsel %vm1601, %v1603, %v1599
        %v1605 = vmul.f32 1.0, %v1604
        %v1606 = vrcp.pop %v1182
        %v1607 = vmul.f32 %v1182, %v1606
        %v1608 = vsub.f32 1.0, %v1607
        %v1609 = vmul.f32 %v1606, %v1608
        %v1610 = vadd.f32 %v1606, %v1609
        %vm1611 = vweird.f32 %v1182
        %vm1612 = vweird.f32 %v1606
        %vm1613 = vmor %vm1611, %vm1612
        %v1614 = vsel %vm1613, %v1606, %v1610
        %v1615 = vand.u32 2147483647, %v1182
        %vm1616 = vcmp.eq.f32.partialorder %v1615, 8.507059e+37
        %v1617 = vand.u32 %v1182, 2147483648
        %v1618 = vor.u32 1.1754944e-38, %v1617
        %v1619 = vsel %vm1616, %v1618, %v1614
        %v1620 = vmul.f32 1.0, %v1619
        %v1621 = vrcp.pop %v1183
        %v1622 = vmul.f32 %v1183, %v1621
        %v1623 = vsub.f32 1.0, %v1622
        %v1624 = vmul.f32 %v1621, %v1623
        %v1625 = vadd.f32 %v1621, %v1624
        %vm1626 = vweird.f32 %v1183
        %vm1627 = vweird.f32 %v1621
        %vm1628 = vmor %vm1626, %vm1627
        %v1629 = vsel %vm1628, %v1621, %v1625
        %v1630 = vand.u32 2147483647, %v1183
        %vm1631 = vcmp.eq.f32.partialorder %v1630, 8.507059e+37
        %v1632 = vand.u32 %v1183, 2147483648
        %v1633 = vor.u32 1.1754944e-38, %v1632
        %v1634 = vsel %vm1631, %v1633, %v1629
        %v1635 = vmul.f32 1.0, %v1634
        %v1636 = vrcp.pop %v1184
        %v1637 = vmul.f32 %v1184, %v1636
        %v1638 = vsub.f32 1.0, %v1637
        %v1639 = vmul.f32 %v1636, %v1638
        %v1640 = vadd.f32 %v1636, %v1639
        %vm1641 = vweird.f32 %v1184
        %vm1642 = vweird.f32 %v1636
        %vm1643 = vmor %vm1641, %vm1642
        %v1644 = vsel %vm1643, %v1636, %v1640
        %v1645 = vand.u32 2147483647, %v1184
        %vm1646 = vcmp.eq.f32.partialorder %v1645, 8.507059e+37
        %v1647 = vand.u32 %v1184, 2147483648
        %v1648 = vor.u32 1.1754944e-38, %v1647
        %v1649 = vsel %vm1646, %v1648, %v1644
        %v1650 = vmul.f32 1.0, %v1649
        %v1651 = vrcp.pop %v1185
        %v1652 = vmul.f32 %v1185, %v1651
        %v1653 = vsub.f32 1.0, %v1652
        %v1654 = vmul.f32 %v1651, %v1653
        %v1655 = vadd.f32 %v1651, %v1654
        %vm1656 = vweird.f32 %v1185
        %vm1657 = vweird.f32 %v1651
        %vm1658 = vmor %vm1656, %vm1657
        %v1659 = vsel %vm1658, %v1651, %v1655
        %v1660 = vand.u32 2147483647, %v1185
        %vm1661 = vcmp.eq.f32.partialorder %v1660, 8.507059e+37
        %v1662 = vand.u32 %v1185, 2147483648
        %v1663 = vor.u32 1.1754944e-38, %v1662
        %v1664 = vsel %vm1661, %v1663, %v1659
        %v1665 = vmul.f32 1.0, %v1664
        %v1666 = vmul.f32 %v1026, %v1200
        %v1667 = vmul.f32 %v1027, %v1215
        %v1668 = vmul.f32 %v1028, %v1230
        %v1669 = vmul.f32 %v1029, %v1245
        %v1670 = vmul.f32 %v1030, %v1260
        %v1671 = vmul.f32 %v1031, %v1275
        %v1672 = vmul.f32 %v1032, %v1290
        %v1673 = vmul.f32 %v1033, %v1305
        %v1674 = vmul.f32 %v1034, %v1320
        %v1675 = vmul.f32 %v1035, %v1335
        %v1676 = vmul.f32 %v1036, %v1350
        %v1677 = vmul.f32 %v1037, %v1365
        %v1678 = vmul.f32 %v1038, %v1380
        %v1679 = vmul.f32 %v1039, %v1395
        %v1680 = vmul.f32 %v1040, %v1410
        %v1681 = vmul.f32 %v1041, %v1425
        %v1682 = vmul.f32 %v1042, %v1440
        %v1683 = vmul.f32 %v1043, %v1455
        %v1684 = vmul.f32 %v1044, %v1470
        %v1685 = vmul.f32 %v1045, %v1485
        %v1686 = vmul.f32 %v1046, %v1500
        %v1687 = vmul.f32 %v1047, %v1515
        %v1688 = vmul.f32 %v1048, %v1530
        %v1689 = vmul.f32 %v1049, %v1545
        %v1690 = vmul.f32 %v1050, %v1560
        %v1691 = vmul.f32 %v1051, %v1575
        %v1692 = vmul.f32 %v1052, %v1590
        %v1693 = vmul.f32 %v1053, %v1605
        %v1694 = vmul.f32 %v1054, %v1620
        %v1695 = vmul.f32 %v1055, %v1635
        %v1696 = vmul.f32 %v1056, %v1650
        %v1697 = vmul.f32 %v1057, %v1665
        %v1698 = vld [vmem:[%s5] sm:$0xf]
        %v1699 = vld [vmem:[%s6] sm:$0xf]
        %1701 = vset.pattern.permute.xlu0 0
        %1702 = vperm.xlu0 %1701, %v1699
        %v1703 = vpop.permute.xlu0 %1702
        %1705 = vmatpush.msra.mxu0 %v1696
        %1706 = vmatpush.msra.mxu0 %v1694
        %1707 = vmatpush.msra.mxu0 %v1692
        %1708 = vmatpush.msra.mxu0 %v1690
        %1709 = vmatpush.msra.mxu0 %v1688
        %1710 = vmatpush.msra.mxu0 %v1686
        %1711 = vmatpush.msra.mxu0 %v1684
        %1712 = vmatpush.msra.mxu0 %v1682
        %1713 = vmatpush.msra.mxu0 %v1680
        %1714 = vmatpush.msra.mxu0 %v1678
        %1715 = vmatpush.msra.mxu0 %v1676
        %1716 = vmatpush.msra.mxu0 %v1674
        %1717 = vmatpush.msra.mxu0 %v1672
        %1718 = vmatpush.msra.mxu0 %v1670
        %1719 = vmatpush.msra.mxu0 %v1668
        %1720 = vmatpush.msra.mxu0 %v1666
        %1721 = vmatmul.f32.gmra.mxu0 %v1698
        %v1722 = vpop.f32.mrf.mxu0
        %v1723 = vadd.f32 %v1703, %v1722
        %1724 = vdwg.mxu0
        %1725 = vmatpush.msra.mxu0 %v1697
        %1726 = vmatpush.msra.mxu0 %v1695
        %1727 = vmatpush.msra.mxu0 %v1693
        %1728 = vmatpush.msra.mxu0 %v1691
        %1729 = vmatpush.msra.mxu0 %v1689
        %1730 = vmatpush.msra.mxu0 %v1687
        %1731 = vmatpush.msra.mxu0 %v1685
        %1732 = vmatpush.msra.mxu0 %v1683
        %1733 = vmatpush.msra.mxu0 %v1681
        %1734 = vmatpush.msra.mxu0 %v1679
        %1735 = vmatpush.msra.mxu0 %v1677
        %1736 = vmatpush.msra.mxu0 %v1675
        %1737 = vmatpush.msra.mxu0 %v1673
        %1738 = vmatpush.msra.mxu0 %v1671
        %1739 = vmatpush.msra.mxu0 %v1669
        %1740 = vmatpush.msra.mxu0 %v1667
        %1741 = vmatmul.f32.gmra.mxu0 %v1698
        %v1742 = vpop.f32.mrf.mxu0
        %v1743 = vadd.f32 %v1703, %v1742
        %1744 = vdwg.mxu0
        %v1747 = vrot.slane %v1743, 4
        %vm1748 = vcmask 1043456
        %v1749 = vsel %vm1748, %v1723, %v1747
        %v1751 = vsub.f32 %v387, %v1749
        %v1752 = vand.u32 2147483647, %v1751
        %1754 = vst [vmem:[#allocation1] ss:$2 sm:$0xff] %v1752
        %v1755 = vld.sshfl [vmem:[#allocation1] sm:$0xff pattern:$0x75316420]
        %v1756 = vld.sshfl [vmem:[#allocation1 + $0x8] sm:$0xff pattern:$0x75316420]
        %v1759 = vsel %vm1748, %v1755, 0.0
        %v1760 = vrot.slane %v1759, 4
        %v1761 = vadd.f32 %v1759, %v1760
        %v1762 = vrot.slane %v1761, 2
        %v1763 = vadd.f32 %v1761, %v1762
        %v1764 = vrot.slane %v1763, 1
        %v1765 = vadd.f32 %v1763, %v1764
        %v1766 = vsel %vm1748, %v1756, 0.0
        %v1767 = vrot.slane %v1766, 4
        %v1768 = vadd.f32 %v1766, %v1767
        %v1769 = vrot.slane %v1768, 2
        %v1770 = vadd.f32 %v1768, %v1769
        %v1771 = vrot.slane %v1770, 1
        %v1772 = vadd.f32 %v1770, %v1771
        %v1773 = vadd.f32 %v1765, %v1772
        %1774 = vadd.xlane.f32.xlu0 %v1773
        %v1775 = vpop.xlane.xlu0 %1774
        %v1776 = vadd.f32 %v1775, 0.0
        %1777 = vst [vmem:[%s380] sm:$0x1] %v1776
        %p1778 = scmp.lt.s32.totalorder %s23, 1
        %s1779 = scalar_select %p1778, %s23, 1
        %p1780 = scmp.lt.s32.totalorder %s24, 0
        %s1781 = scalar_select %p1780, %s24, 0
        %s1782 = sadd.s32 %s1781, %s1779
        %s1783 = scalar_lea.vmem %s7, %s1782
        // Predicated region
        $region53: #{run_diffusion_forward.3} parent=47 // pred_check
          %p1784 = pneg %p217
        $region54: #{run_diffusion_forward.3} parent=47 // pred_check_branch
          %1786 = sbr.rel (%p1784) target = $region56
        $region55: #{run_diffusion_forward.3} parent=47 // pred_region
          _
        $region56: #{run_diffusion_forward.3} parent=47 // pred_fallthru
          _
      $region48: #{run_diffusion_forward.3} parent=5 // pred_fallthru
        _
      %p1787 = scmp.le.s32.totalorder 2, %s14
      // Predicated region
      $region57: #{run_diffusion_forward.3} parent=5 // pred_check
        %p1788 = pneg %p1787
      $region58: #{run_diffusion_forward.3} parent=5 // pred_check_branch
        %1790 = sbr.rel (%p1788) target = $region60
      $region59: #{run_diffusion_forward.3} parent=5 // pred_region
        %s1791 = ssub.s32 %s14, 2
        // Predicated region
        $region61: #{run_diffusion_forward.3} parent=59 // pred_check
          %p1792 = pneg %p223
        $region62: #{run_diffusion_forward.3} parent=59 // pred_check_branch
          %1794 = sbr.rel (%p1792) target = $region64
        $region63: #{run_diffusion_forward.3} parent=59 // pred_region
          %p1795 = scmp.lt.s32.totalorder %s25, 1
          %s1796 = scalar_select %p1795, %s25, 1
          %p1797 = scmp.lt.s32.totalorder %s26, 0
          %s1798 = scalar_select %p1797, %s26, 0
          %s1799 = sadd.s32 %s1798, %s1796
          %s1800 = scalar_lea.vmem %s7, %s1799
        $region64: #{run_diffusion_forward.3} parent=59 // pred_fallthru
          _
      $region60: #{run_diffusion_forward.3} parent=5 // pred_fallthru
        _
    $region6: #{run_diffusion_forward.3} parent=1 // loop_footer
      %s18 = sadd.s32 1, %s14
    $region7: #{run_diffusion_forward.3} parent=1 // loop_footer_branch
      %13 = sbr.rel target = $region3
    $region8: #{run_diffusion_forward.3} parent=1 // loop_exit
      _
    %1801 = vsyncpa [#allocation3], 1
    %s1802 = scalar_lea.sflag [#allocation3], 1
    %1803 = vsyncpa %s1802, 1

</llo_original>
